<compile_context>
chip_gen: v6e
topology: v6e:2x2x1
jax: 0.10.0
libtpu: 0.0.40
codegen_flags: <defaults>
</compile_context>

<pallas_src>
import functools

import jax
import jax.numpy as jnp
from jax import lax
from jax.experimental import pallas as pl
from jax.experimental.pallas import tpu as pltpu


# ----------------------------------------------------------------------------
# Static helpers.
# ----------------------------------------------------------------------------
def _pick_key_tile(nums, max_resident=1024, tiles=(512, 384, 256, 128)):
    """Full-nums tile (score matrix kept resident) when small, else a 128-
    multiple key tile so the streamed path bounds VMEM on v7x."""
    if nums <= max_resident:
        return nums
    for t in tiles:
        if nums % t == 0:
            return t
    return nums  # TODO(synk): pad + mask ragged key tiles instead of falling back.


def _pick_spatial_tile(nums, tiles=(2048, 1024, 512, 256, 128)):
    if nums <= tiles[0]:
        return nums
    for t in tiles:
        if nums % t == 0:
            return t
    return nums


def _vmem_limit_bytes(frac=0.8, fallback=48 * 2**20):
    """Generation-aware scoped VMEM: ~80% of per-core capacity (v7x 64 MiB,
    v5e/v6e 128 MiB).  Conservative fallback if the query is unavailable."""
    try:
        return int(frac * pltpu.get_tpu_info().vmem_capacity_bytes)
    except Exception:
        return fallback


def _expand_grouped_weight(w, gp):
    """(ch, ch//gp) grouped 1x1-conv weight -> block-diagonal (out_ch, in_ch)."""
    ch, cpg = w.shape
    full = jnp.zeros((ch, ch), w.dtype)
    for g in range(gp):
        full = full.at[g * cpg:(g + 1) * cpg, g * cpg:(g + 1) * cpg].set(
            w[g * cpg:(g + 1) * cpg])
    return full


# ----------------------------------------------------------------------------
# Pass 1: per-batch attention + trans_conv (key-axis streamed), emitting t and
#         shifted BatchNorm partial statistics.
# ----------------------------------------------------------------------------
def _attn_trans_kernel(x_ref, wstack_ref, wt_ref, bv_ref, bt_ref,
                       t_ref, stats_ref, *, tk, nk):
    ch = x_ref.shape[1]
    nums = x_ref.shape[2]
    cdt = wstack_ref.dtype                             # MXU operand dtype
    approx = jnp.dtype(cdt) == jnp.dtype(jnp.bfloat16)

    xb = x_ref[0]                                      # (ch, nums), NCW, f32
    xc = xb.astype(cdt)

    # Stacked channel projections: [Wqk; Wv; Wt] @ x in ONE tall MXU matmul
    # (better MXU row occupancy when ch < 256).
    proj = jnp.dot(wstack_ref[...], xc, preferred_element_type=jnp.float32)
    z = proj[0:ch]                                     # Wqk @ x   (ch, nums)
    xv = proj[ch:2 * ch] + bv_ref[...]                 # v_conv(x) (ch, nums)
    wtx = proj[2 * ch:3 * ch]                          # Wt @ x    (ch, nums)
    zc = z.astype(cdt)
    xvc = xv.astype(cdt)
    ones_q = jnp.ones((1, nums), cdt)                  # MXU column-sum row

    # Energy tile = x^T @ z_tile, contracting the channel axis of BOTH operands
    # (no explicit/materialised transpose of x).
    dn = (((0,), (0,)), ((), ()))

    # ---- pass A: online-softmax row statistics over streamed key tiles -----
    keep_e = nk == 1                       # small nums: keep scores, no recompute
    m_i = jnp.full((nums, 1), -jnp.inf, jnp.float32)
    l_i = jnp.zeros((nums, 1), jnp.float32)
    e_saved = None
    for kt in range(nk):
        e = lax.dot_general(xc, zc[:, kt * tk:(kt + 1) * tk], dn,
                            preferred_element_type=jnp.float32)   # (nums, tk)
        if keep_e:
            e_saved = e
        m_new = jnp.maximum(m_i, jnp.max(e, axis=-1, keepdims=True))
        l_i = (l_i * jnp.exp(m_i - m_new)
               + jnp.sum(jnp.exp(e - m_new), axis=-1, keepdims=True))
        m_i = m_new
    lse = m_i + jnp.log(l_i)               # exp(e - lse) == row softmax, no div

    # ---- pass B: column renorm + value mix + trans_conv, streamed over keys --
    shift = None
    s1 = jnp.zeros((ch, 1), jnp.float32)
    s2 = jnp.zeros((ch, 1), jnp.float32)
    for kt in range(nk):
        sl = slice(kt * tk, (kt + 1) * tk)
        if keep_e:
            e = e_saved
        else:
            e = lax.dot_general(xc, zc[:, sl], dn,
                                preferred_element_type=jnp.float32)
        p = jnp.exp(e - lse).astype(cdt)                          # (nums, tk)
        # dim=1 column sums on the MXU (slack there) instead of a sublane reduce.
        colsum = jnp.dot(ones_q, p, preferred_element_type=jnp.float32)  # (1, tk)
        xr = jnp.dot(xvc, p, preferred_element_type=jnp.float32)         # (ch, tk)
        # per-column renorm commutes with the value matmul.
        xr = xr * pl.reciprocal(1e-9 + colsum, approx=approx)
        t = (wtx[:, sl]
             - jnp.dot(wt_ref[...], xr.astype(cdt),
                       preferred_element_type=jnp.float32)
             + bt_ref[...])                                       # (ch, tk)
        t_ref[0, :, sl] = t.astype(t_ref.dtype)

        if kt == 0:
            shift = t[:, 0:1]              # numerics anchor for the variance
        d = t - shift
        s1 = s1 + jnp.sum(d, axis=-1, keepdims=True)
        s2 = s2 + jnp.sum(d * d, axis=-1, keepdims=True)

    stats_ref[0, :, 0:1] = shift
    stats_ref[0, :, 1:2] = s1
    stats_ref[0, :, 2:3] = s2


# ----------------------------------------------------------------------------
# Pass 2: BatchNorm affine (precomputed global scale/shift) + ReLU + residual.
# ----------------------------------------------------------------------------
def _bn_relu_residual_kernel(x_ref, t_ref, scale_ref, shift_ref, o_ref):
    tn = t_ref[0].astype(jnp.float32) * scale_ref[...] + shift_ref[...]
    o_ref[0] = (x_ref[0] + jnp.maximum(tn, 0.0)).astype(o_ref.dtype)


# ----------------------------------------------------------------------------
# Wrapper.
# ----------------------------------------------------------------------------
@functools.partial(jax.jit, static_argnames=("gp", "mxu_dtype", "key_tile"))
def g_transformer_forward(x, params, *, gp, mxu_dtype=jnp.float32, key_tile=None):
    """x: (bs, ch, nums) float32, NCW exactly like the PyTorch module."""
    bs, ch, nums = x.shape
    cdt = jnp.dtype(mxu_dtype)
    # bf16 fast path also halves the t HBM round-trip; stats stay f32.
    t_dtype = jnp.bfloat16 if cdt == jnp.dtype(jnp.bfloat16) else jnp.float32

    # --- weight prep (once, outside the kernels) ------------------------------
    wq_full = _expand_grouped_weight(params['wq'], gp)
    wk_full = _expand_grouped_weight(params['wk'], gp)
    wqk = jnp.dot(wq_full.T, wk_full)                       # folded q/k (ch, ch)
    wstack = jnp.concatenate([wqk, params['wv'], params['wt']],
                             axis=0).astype(cdt)            # (3ch, ch)
    wt = params['wt'].astype(cdt)
    bv = params['bv'].reshape(ch, 1).astype(jnp.float32)
    bt = params['bt'].reshape(ch, 1).astype(jnp.float32)

    tk = key_tile if key_tile is not None else _pick_key_tile(nums)
    assert nums % tk == 0, (nums, tk)
    nk = nums // tk
    vmem_limit = _vmem_limit_bytes()

    # --- cost estimate ---------------------------------------------------------
    passes = 1 if nk == 1 else 2
    cdt_bytes = jnp.dtype(cdt).itemsize
    t_bytes = jnp.dtype(t_dtype).itemsize
    flops = bs * (2 * (3 * ch) * ch * nums            # stacked projections
                  + 2 * ch * ch * nums                # Wt @ x_r
                  + passes * 2 * ch * nums * nums     # energy (recompute if streamed)
                  + 2 * ch * nums * nums              # x_v @ attn
                  + 2 * nums * nums                   # column sums
                  + 12 * nums * nums)                 # softmax / renorm elementwise
    transcendentals = bs * (2 * nums * nums + nums)
    bytes_accessed = (4 * bs * ch * nums + t_bytes * bs * ch * nums
                      + 4 * bs * ch * 3 + 4 * ch * ch * cdt_bytes + 8 * ch)
    cost = pl.CostEstimate(flops=int(flops), transcendentals=int(transcendentals),
                           bytes_accessed=int(bytes_accessed))

    kernel = functools.partial(_attn_trans_kernel, tk=tk, nk=nk)

    # --- pass 1 ---------------------------------------------------------------
    t, stats = pl.pallas_call(
        kernel,
        out_shape=(jax.ShapeDtypeStruct((bs, ch, nums), t_dtype),
                   jax.ShapeDtypeStruct((bs, ch, 3), jnp.float32)),
        grid=(bs,),
        in_specs=[
            pl.BlockSpec((1, ch, nums), lambda b: (b, 0, 0)),
            pl.BlockSpec((3 * ch, ch), lambda b: (0, 0)),
            pl.BlockSpec((ch, ch), lambda b: (0, 0)),
            pl.BlockSpec((ch, 1), lambda b: (0, 0)),
            pl.BlockSpec((ch, 1), lambda b: (0, 0)),
        ],
        out_specs=(pl.BlockSpec((1, ch, nums), lambda b: (b, 0, 0)),
                   pl.BlockSpec((1, ch, 3), lambda b: (b, 0, 0))),
        compiler_params=pltpu.CompilerParams(
            dimension_semantics=("parallel",),
            vmem_limit_bytes=vmem_limit),
        cost_estimate=cost,
    )(x, wstack, wt, bv, bt)

    # --- global BatchNorm stats: shifted / Chan-style parallel combine --------
    shift_b = stats[:, :, 0]                              # per-batch anchor (bs, ch)
    s1_b = stats[:, :, 1]                                 # sum(t - anchor)
    s2_b = stats[:, :, 2]                                 # sum((t - anchor)^2)
    n = float(nums)
    mean_b = shift_b + s1_b / n                           # per-batch mean
    m2_b = jnp.maximum(s2_b - s1_b * s1_b / n, 0.0)       # per-batch sum squared dev
    mean = jnp.mean(mean_b, axis=0)                       # (ch,)
    m2 = jnp.sum(m2_b, axis=0) + n * jnp.sum((mean_b - mean[None, :]) ** 2, axis=0)
    var = jnp.maximum(m2 / (bs * n), 0.0)                 # biased, as BN training mode
    scale = params['gamma'] * lax.rsqrt(var + 1e-5)
    shift = params['beta'] - mean * scale
    scale = scale.reshape(ch, 1).astype(jnp.float32)
    shift = shift.reshape(ch, 1).astype(jnp.float32)

    # --- pass 2: BN + ReLU + residual, tiled over nums -------------------------
    tn_blk = _pick_spatial_tile(nums)
    out = pl.pallas_call(
        _bn_relu_residual_kernel,
        out_shape=jax.ShapeDtypeStruct((bs, ch, nums), x.dtype),
        grid=(bs, nums // tn_blk),
        in_specs=[
            pl.BlockSpec((1, ch, tn_blk), lambda b, j: (b, 0, j)),
            pl.BlockSpec((1, ch, tn_blk), lambda b, j: (b, 0, j)),
            pl.BlockSpec((ch, 1), lambda b, j: (0, 0)),
            pl.BlockSpec((ch, 1), lambda b, j: (0, 0)),
        ],
        out_specs=pl.BlockSpec((1, ch, tn_blk), lambda b, j: (b, 0, j)),
        compiler_params=pltpu.CompilerParams(
            dimension_semantics=("parallel", "parallel"),
            vmem_limit_bytes=vmem_limit),
    )(x, t, scale, shift)
    return out


# ----------------------------------------------------------------------------
# Pure-JAX reference mirroring the PyTorch forward (NCW layout).
# ----------------------------------------------------------------------------
def g_transformer_ref(x, params, gp):
    bs, ch, nums = x.shape
    cpg = ch // gp
    wq_full = _expand_grouped_weight(params['wq'], gp)
    wk_full = _expand_grouped_weight(params['wk'], gp)
    xq = jnp.einsum('oc,bcn->bon', wq_full, x).reshape(bs, gp, cpg, nums)
    xq = xq.transpose(0, 1, 3, 2)
    xk = jnp.einsum('oc,bcn->bon', wk_full, x).reshape(bs, gp, cpg, nums)
    xv = jnp.einsum('oc,bcn->bon', params['wv'], x) + params['bv'][None, :, None]
    energy = jnp.einsum('bgni,bgim->bnm', xq, xk)           # sum over groups
    attn = jax.nn.softmax(energy, axis=-1)
    attn = attn / (1e-9 + jnp.sum(attn, axis=1, keepdims=True))
    xr = jnp.einsum('bcn,bnm->bcm', xv, attn)
    t = jnp.einsum('oc,bcn->bon', params['wt'], x - xr) + params['bt'][None, :, None]
    mean = jnp.mean(t, axis=(0, 2), keepdims=True)
    var = jnp.mean((t - mean) ** 2, axis=(0, 2), keepdims=True)
    tn = (t - mean) / jnp.sqrt(var + 1e-5)
    tn = tn * params['gamma'][None, :, None] + params['beta'][None, :, None]
    return x + jnp.maximum(tn, 0.0)


if __name__ == "__main__":
    bs, ch, nums, gp = 2, 8, 16, 2     # channels % 4 == 0, channels % gp == 0
    key = jax.random.PRNGKey(0)
    ks = jax.random.split(key, 8)

    x = jax.random.normal(ks[0], (bs, ch, nums), jnp.float32)
    params = {
        'wq': 0.2 * jax.random.normal(ks[1], (ch, ch // gp), jnp.float32),
        'wk': 0.2 * jax.random.normal(ks[2], (ch, ch // gp), jnp.float32),
        'wv': 0.2 * jax.random.normal(ks[3], (ch, ch), jnp.float32),
        'bv': 0.1 * jax.random.normal(ks[4], (ch,), jnp.float32),
        'wt': 0.2 * jax.random.normal(ks[5], (ch, ch), jnp.float32),
        'bt': 0.1 * jax.random.normal(ks[6], (ch,), jnp.float32),
        'gamma': jnp.ones((ch,), jnp.float32),   # BatchNorm weight init
        'beta': jnp.zeros((ch,), jnp.float32),   # BatchNorm bias init
    }

    # 1) f32 path, scores kept resident (nk == 1).
    ref = g_transformer_ref(x, params, gp)
    out = jax.block_until_ready(g_transformer_forward(x, params, gp=gp))
    assert out.shape == (bs, ch, nums), out.shape
    err = float(jnp.max(jnp.abs(out - ref)))
    assert jnp.allclose(out, ref, rtol=2e-2, atol=2e-2), f"f32 max abs err={err}"

    # 2) f32 path, forced key-axis streaming (online softmax + 2nd key sweep).
    nums2 = 256
    x2 = jax.random.normal(ks[7], (bs, ch, nums2), jnp.float32)
    ref2 = g_transformer_ref(x2, params, gp)
    out2 = jax.block_until_ready(
        g_transformer_forward(x2, params, gp=gp, key_tile=128))
    err2 = float(jnp.max(jnp.abs(out2 - ref2)))
    assert jnp.allclose(out2, ref2, rtol=2e-2, atol=2e-2), \
        f"streamed max abs err={err2}"

    # 3) bf16 MXU fast path (bf16 operands + bf16 t round-trip, f32 accumulate).
    out_bf = jax.block_until_ready(
        g_transformer_forward(x, params, gp=gp, mxu_dtype=jnp.bfloat16))
    err_bf = float(jnp.max(jnp.abs(out_bf - ref)))
    assert jnp.allclose(out_bf, ref, rtol=1e-1, atol=1e-1), \
        f"bf16 max abs err={err_bf}"

    print("KERNEL_OK")
</pallas_src>

<mosaic_0001>
module attributes {stable_mosaic.version = 11 : i64} {
  func.func @_bn_relu_residual_kernel(%arg0: i32, %arg1: i32, %arg2: memref<1x8x16xf32, #tpu.memory_space<vmem>>, %arg3: memref<1x8x16xf32, #tpu.memory_space<vmem>>, %arg4: memref<8x1xf32, #tpu.memory_space<vmem>>, %arg5: memref<8x1xf32, #tpu.memory_space<vmem>>, %arg6: memref<1x8x16xf32, #tpu.memory_space<vmem>>) attributes {dimension_semantics = [#tpu.dimension_semantics<parallel>, #tpu.dimension_semantics<parallel>], iteration_bounds = array<i64: 2, 1>, scalar_prefetch = 0 : i64, scratch_operands = 0 : i64, tpu.core_type = #tpu.core_type<tc>, window_params = [{transform_indices = @transform_0, window_bounds = array<i64: 1, 8, 16>}, {transform_indices = @transform_1, window_bounds = array<i64: 1, 8, 16>}, {pipeline_mode = #tpu.pipeline_mode<synchronous>, transform_indices = @transform_2, window_bounds = array<i64: 8, 1>}, {pipeline_mode = #tpu.pipeline_mode<synchronous>, transform_indices = @transform_3, window_bounds = array<i64: 8, 1>}, {transform_indices = @transform_4, window_bounds = array<i64: 1, 8, 16>}]} {
    %c0 = arith.constant 0 : index
    %c0_0 = arith.constant 0 : index
    %c0_1 = arith.constant 0 : index
    %0 = vector.load %arg3[%c0, %c0_0, %c0_1] : memref<1x8x16xf32, #tpu.memory_space<vmem>>, vector<1x8x16xf32>
    %1 = vector.shape_cast %0 : vector<1x8x16xf32> to vector<8x16xf32>
    %c0_2 = arith.constant 0 : index
    %c0_3 = arith.constant 0 : index
    %2 = vector.load %arg4[%c0_2, %c0_3] : memref<8x1xf32, #tpu.memory_space<vmem>>, vector<8x1xf32>
    %3 = vector.broadcast %2 : vector<8x1xf32> to vector<8x16xf32>
    %4 = arith.mulf %1, %3 : vector<8x16xf32>
    %c0_4 = arith.constant 0 : index
    %c0_5 = arith.constant 0 : index
    %5 = vector.load %arg5[%c0_4, %c0_5] : memref<8x1xf32, #tpu.memory_space<vmem>>, vector<8x1xf32>
    %6 = vector.broadcast %5 : vector<8x1xf32> to vector<8x16xf32>
    %7 = arith.addf %4, %6 : vector<8x16xf32>
    %c0_6 = arith.constant 0 : index
    %c0_7 = arith.constant 0 : index
    %c0_8 = arith.constant 0 : index
    %8 = vector.load %arg2[%c0_6, %c0_7, %c0_8] : memref<1x8x16xf32, #tpu.memory_space<vmem>>, vector<1x8x16xf32>
    %9 = vector.shape_cast %8 : vector<1x8x16xf32> to vector<8x16xf32>
    %cst = arith.constant 0.000000e+00 : f32
    %10 = vector.broadcast %cst : f32 to vector<8x16xf32>
    %11 = arith.maximumf %7, %10 : vector<8x16xf32>
    %12 = arith.addf %9, %11 : vector<8x16xf32>
    %c0_9 = arith.constant 0 : index
    %c0_10 = arith.constant 0 : index
    %c0_11 = arith.constant 0 : index
    %13 = vector.load %arg6[%c0_9, %c0_10, %c0_11] : memref<1x8x16xf32, #tpu.memory_space<vmem>>, vector<1x8x16xf32>
    %14 = vector.shape_cast %13 : vector<1x8x16xf32> to vector<8x16xf32>
    %15 = vector.shape_cast %12 : vector<8x16xf32> to vector<1x8x16xf32>
    tpu.vector_store %arg6[%c0_9, %c0_10, %c0_11], %15 {strides = array<i32>} : memref<1x8x16xf32, #tpu.memory_space<vmem>>, vector<1x8x16xf32>,
    return
  }
  func.func @transform_0(%arg0: i32, %arg1: i32) -> (i32, i32, i32) {
    %c0_i32 = arith.constant 0 : i32
    %c0_i32_0 = arith.constant 0 : i32
    return %arg0, %c0_i32, %arg1 : i32, i32, i32
  }
  func.func @transform_1(%arg0: i32, %arg1: i32) -> (i32, i32, i32) {
    %c0_i32 = arith.constant 0 : i32
    %c0_i32_0 = arith.constant 0 : i32
    return %arg0, %c0_i32, %arg1 : i32, i32, i32
  }
  func.func @transform_2(%arg0: i32, %arg1: i32) -> (i32, i32) {
    %c0_i32 = arith.constant 0 : i32
    %c0_i32_0 = arith.constant 0 : i32
    %c0_i32_1 = arith.constant 0 : i32
    return %c0_i32, %c0_i32_0 : i32, i32
  }
  func.func @transform_3(%arg0: i32, %arg1: i32) -> (i32, i32) {
    %c0_i32 = arith.constant 0 : i32
    %c0_i32_0 = arith.constant 0 : i32
    %c0_i32_1 = arith.constant 0 : i32
    return %c0_i32, %c0_i32_0 : i32, i32
  }
  func.func @transform_4(%arg0: i32, %arg1: i32) -> (i32, i32, i32) {
    %c0_i32 = arith.constant 0 : i32
    %c0_i32_0 = arith.constant 0 : i32
    return %arg0, %c0_i32, %arg1 : i32, i32, i32
  }
}

module attributes {stable_mosaic.version = 11 : i64} {
  func.func @_attn_trans_kernel(%arg0: i32, %arg1: memref<1x8x16xf32, #tpu.memory_space<vmem>>, %arg2: memref<24x8xf32, #tpu.memory_space<vmem>>, %arg3: memref<8x8xf32, #tpu.memory_space<vmem>>, %arg4: memref<8x1xf32, #tpu.memory_space<vmem>>, %arg5: memref<8x1xf32, #tpu.memory_space<vmem>>, %arg6: memref<1x8x16xf32, #tpu.memory_space<vmem>>, %arg7: memref<1x8x3xf32, #tpu.memory_space<vmem>>) attributes {dimension_semantics = [#tpu.dimension_semantics<parallel>], iteration_bounds = array<i64: 2>, scalar_prefetch = 0 : i64, scratch_operands = 0 : i64, tpu.core_type = #tpu.core_type<tc>, window_params = [{transform_indices = @transform_0, window_bounds = array<i64: 1, 8, 16>}, {pipeline_mode = #tpu.pipeline_mode<synchronous>, transform_indices = @transform_1, window_bounds = array<i64: 24, 8>}, {pipeline_mode = #tpu.pipeline_mode<synchronous>, transform_indices = @transform_2, window_bounds = array<i64: 8, 8>}, {pipeline_mode = #tpu.pipeline_mode<synchronous>, transform_indices = @transform_3, window_bounds = array<i64: 8, 1>}, {pipeline_mode = #tpu.pipeline_mode<synchronous>, transform_indices = @transform_4, window_bounds = array<i64: 8, 1>}, {transform_indices = @transform_5, window_bounds = array<i64: 1, 8, 16>}, {transform_indices = @transform_6, window_bounds = array<i64: 1, 8, 3>}]} {
    %c0 = arith.constant 0 : index
    %c0_0 = arith.constant 0 : index
    %c0_1 = arith.constant 0 : index
    %0 = vector.load %arg1[%c0, %c0_0, %c0_1] : memref<1x8x16xf32, #tpu.memory_space<vmem>>, vector<1x8x16xf32>
    %1 = vector.shape_cast %0 : vector<1x8x16xf32> to vector<8x16xf32>
    %c0_2 = arith.constant 0 : index
    %c0_3 = arith.constant 0 : index
    %2 = vector.load %arg2[%c0_2, %c0_3] : memref<24x8xf32, #tpu.memory_space<vmem>>, vector<24x8xf32>
    %cst = arith.constant dense<0.000000e+00> : vector<24x16xf32>
    %3 = tpu.matmul %2, %1, %cst {dimension_numbers = #tpu.dot_dimension_numbers<[1], [0], [0], [1], [0, 0, 1, 1], [], []>} : vector<24x8xf32>, vector<8x16xf32>, vector<24x16xf32> -> vector<24x16xf32>
    %4 = vector.extract_strided_slice %3 {offsets = [0, 0], sizes = [8, 16], strides = [1, 1]} : vector<24x16xf32> to vector<8x16xf32>
    %5 = vector.extract_strided_slice %3 {offsets = [8, 0], sizes = [8, 16], strides = [1, 1]} : vector<24x16xf32> to vector<8x16xf32>
    %c0_4 = arith.constant 0 : index
    %c0_5 = arith.constant 0 : index
    %6 = vector.load %arg4[%c0_4, %c0_5] : memref<8x1xf32, #tpu.memory_space<vmem>>, vector<8x1xf32>
    %7 = vector.broadcast %6 : vector<8x1xf32> to vector<8x16xf32>
    %8 = arith.addf %5, %7 : vector<8x16xf32>
    %9 = vector.extract_strided_slice %3 {offsets = [16, 0], sizes = [8, 16], strides = [1, 1]} : vector<24x16xf32> to vector<8x16xf32>
    %cst_6 = arith.constant 1.000000e+00 : f32
    %10 = vector.broadcast %cst_6 : f32 to vector<1x16xf32>
    %cst_7 = arith.constant 0xFF800000 : f32
    %11 = vector.broadcast %cst_7 : f32 to vector<16x1xf32>
    %cst_8 = arith.constant 0.000000e+00 : f32
    %12 = vector.broadcast %cst_8 : f32 to vector<16x1xf32>
    %cst_9 = arith.constant dense<0.000000e+00> : vector<16x16xf32>
    %13 = tpu.matmul %1, %4, %cst_9 {dimension_numbers = #tpu.dot_dimension_numbers<[0], [0], [1], [1], [0, 1, 1, 1], [], []>} : vector<8x16xf32>, vector<8x16xf32>, vector<16x16xf32> -> vector<16x16xf32>
    %cst_10 = arith.constant dense<0xFF800000> : vector<16xf32>
    %14 = vector.multi_reduction <maximumf>, %13, %cst_10 [1] : vector<16x16xf32> to vector<16xf32>
    %15 = vector.shape_cast %14 : vector<16xf32> to vector<16x1xf32>
    %16 = arith.maximumf %11, %15 : vector<16x1xf32>
    %17 = arith.subf %11, %16 : vector<16x1xf32>
    %18 = math.exp %17 : vector<16x1xf32>
    %19 = arith.mulf %12, %18 : vector<16x1xf32>
    %20 = vector.broadcast %16 : vector<16x1xf32> to vector<16x16xf32>
    %21 = arith.subf %13, %20 : vector<16x16xf32>
    %22 = math.exp %21 : vector<16x16xf32>
    %cst_11 = arith.constant dense<0.000000e+00> : vector<16xf32>
    %23 = vector.multi_reduction <add>, %22, %cst_11 [1] : vector<16x16xf32> to vector<16xf32>
    %24 = vector.shape_cast %23 : vector<16xf32> to vector<16x1xf32>
    %25 = arith.addf %19, %24 : vector<16x1xf32>
    %26 = math.log %25 : vector<16x1xf32>
    %27 = arith.addf %16, %26 : vector<16x1xf32>
    %cst_12 = arith.constant 0.000000e+00 : f32
    %28 = vector.broadcast %cst_12 : f32 to vector<8x1xf32>
    %cst_13 = arith.constant 0.000000e+00 : f32
    %29 = vector.broadcast %cst_13 : f32 to vector<8x1xf32>
    %30 = vector.broadcast %27 : vector<16x1xf32> to vector<16x16xf32>
    %31 = arith.subf %13, %30 : vector<16x16xf32>
    %32 = math.exp %31 : vector<16x16xf32>
    %cst_14 = arith.constant dense<0.000000e+00> : vector<1x16xf32>
    %33 = tpu.matmul %10, %32, %cst_14 {dimension_numbers = #tpu.dot_dimension_numbers<[1], [0], [0], [1], [0, 0, 1, 1], [], []>} : vector<1x16xf32>, vector<16x16xf32>, vector<1x16xf32> -> vector<1x16xf32>
    %cst_15 = arith.constant dense<0.000000e+00> : vector<8x16xf32>
    %34 = tpu.matmul %8, %32, %cst_15 {dimension_numbers = #tpu.dot_dimension_numbers<[1], [0], [0], [1], [0, 0, 1, 1], [], []>} : vector<8x16xf32>, vector<16x16xf32>, vector<8x16xf32> -> vector<8x16xf32>
    %cst_16 = arith.constant 9.99999971E-10 : f32
    %35 = vector.broadcast %cst_16 : f32 to vector<1x16xf32>
    %36 = arith.addf %35, %33 : vector<1x16xf32>
    %37 = tpu.reciprocal %36 : vector<1x16xf32> -> vector<1x16xf32>
    %38 = vector.broadcast %37 : vector<1x16xf32> to vector<8x16xf32>
    %39 = arith.mulf %34, %38 : vector<8x16xf32>
    %c0_17 = arith.constant 0 : index
    %c0_18 = arith.constant 0 : index
    %40 = vector.load %arg3[%c0_17, %c0_18] : memref<8x8xf32, #tpu.memory_space<vmem>>, vector<8x8xf32>
    %cst_19 = arith.constant dense<0.000000e+00> : vector<8x16xf32>
    %41 = tpu.matmul %40, %39, %cst_19 {dimension_numbers = #tpu.dot_dimension_numbers<[1], [0], [0], [1], [0, 0, 1, 1], [], []>} : vector<8x8xf32>, vector<8x16xf32>, vector<8x16xf32> -> vector<8x16xf32>
    %42 = arith.subf %9, %41 : vector<8x16xf32>
    %c0_20 = arith.constant 0 : index
    %c0_21 = arith.constant 0 : index
    %43 = vector.load %arg5[%c0_20, %c0_21] : memref<8x1xf32, #tpu.memory_space<vmem>>, vector<8x1xf32>
    %44 = vector.broadcast %43 : vector<8x1xf32> to vector<8x16xf32>
    %45 = arith.addf %42, %44 : vector<8x16xf32>
    %c0_22 = arith.constant 0 : index
    %c0_23 = arith.constant 0 : index
    %c0_24 = arith.constant 0 : index
    %46 = vector.load %arg6[%c0_22, %c0_23, %c0_24] : memref<1x8x16xf32, #tpu.memory_space<vmem>>, vector<1x8x16xf32>
    %47 = vector.shape_cast %46 : vector<1x8x16xf32> to vector<8x16xf32>
    %48 = vector.shape_cast %45 : vector<8x16xf32> to vector<1x8x16xf32>
    tpu.vector_store %arg6[%c0_22, %c0_23, %c0_24], %48 {strides = array<i32>} : memref<1x8x16xf32, #tpu.memory_space<vmem>>, vector<1x8x16xf32>,
    %49 = vector.extract_strided_slice %45 {offsets = [0, 0], sizes = [8, 1], strides = [1, 1]} : vector<8x16xf32> to vector<8x1xf32>
    %50 = vector.broadcast %49 : vector<8x1xf32> to vector<8x16xf32>
    %51 = arith.subf %45, %50 : vector<8x16xf32>
    %cst_25 = arith.constant dense<0.000000e+00> : vector<8xf32>
    %52 = vector.multi_reduction <add>, %51, %cst_25 [1] : vector<8x16xf32> to vector<8xf32>
    %53 = vector.shape_cast %52 : vector<8xf32> to vector<8x1xf32>
    %54 = arith.addf %28, %53 : vector<8x1xf32>
    %55 = arith.mulf %51, %51 : vector<8x16xf32>
    %cst_26 = arith.constant dense<0.000000e+00> : vector<8xf32>
    %56 = vector.multi_reduction <add>, %55, %cst_26 [1] : vector<8x16xf32> to vector<8xf32>
    %57 = vector.shape_cast %56 : vector<8xf32> to vector<8x1xf32>
    %58 = arith.addf %29, %57 : vector<8x1xf32>
    %c0_27 = arith.constant 0 : index
    %c0_28 = arith.constant 0 : index
    %c0_29 = arith.constant 0 : index
    %59 = vector.load %arg7[%c0_27, %c0_28, %c0_29] : memref<1x8x3xf32, #tpu.memory_space<vmem>>, vector<1x8x1xf32>
    %60 = vector.shape_cast %59 : vector<1x8x1xf32> to vector<8x1xf32>
    %61 = vector.shape_cast %49 : vector<8x1xf32> to vector<1x8x1xf32>
    tpu.vector_store %arg7[%c0_27, %c0_28, %c0_29], %61 {strides = array<i32>} : memref<1x8x3xf32, #tpu.memory_space<vmem>>, vector<1x8x1xf32>,
    %c0_30 = arith.constant 0 : index
    %c0_31 = arith.constant 0 : index
    %c1 = arith.constant 1 : index
    %62 = vector.load %arg7[%c0_30, %c0_31, %c1] : memref<1x8x3xf32, #tpu.memory_space<vmem>>, vector<1x8x1xf32>
    %63 = vector.shape_cast %62 : vector<1x8x1xf32> to vector<8x1xf32>
    %64 = vector.shape_cast %54 : vector<8x1xf32> to vector<1x8x1xf32>
    tpu.vector_store %arg7[%c0_30, %c0_31, %c1], %64 {strides = array<i32>} : memref<1x8x3xf32, #tpu.memory_space<vmem>>, vector<1x8x1xf32>,
    %c0_32 = arith.constant 0 : index
    %c0_33 = arith.constant 0 : index
    %c2 = arith.constant 2 : index
    %65 = vector.load %arg7[%c0_32, %c0_33, %c2] : memref<1x8x3xf32, #tpu.memory_space<vmem>>, vector<1x8x1xf32>
    %66 = vector.shape_cast %65 : vector<1x8x1xf32> to vector<8x1xf32>
    %67 = vector.shape_cast %58 : vector<8x1xf32> to vector<1x8x1xf32>
    tpu.vector_store %arg7[%c0_32, %c0_33, %c2], %67 {strides = array<i32>} : memref<1x8x3xf32, #tpu.memory_space<vmem>>, vector<1x8x1xf32>,
    return
  }
  func.func @transform_0(%arg0: i32) -> (i32, i32, i32) {
    %c0_i32 = arith.constant 0 : i32
    %c0_i32_0 = arith.constant 0 : i32
    %c0_i32_1 = arith.constant 0 : i32
    return %arg0, %c0_i32, %c0_i32_0 : i32, i32, i32
  }
  func.func @transform_1(%arg0: i32) -> (i32, i32) {
    %c0_i32 = arith.constant 0 : i32
    %c0_i32_0 = arith.constant 0 : i32
    %c0_i32_1 = arith.constant 0 : i32
    return %c0_i32, %c0_i32_0 : i32, i32
  }
  func.func @transform_2(%arg0: i32) -> (i32, i32) {
    %c0_i32 = arith.constant 0 : i32
    %c0_i32_0 = arith.constant 0 : i32
    %c0_i32_1 = arith.constant 0 : i32
    return %c0_i32, %c0_i32_0 : i32, i32
  }
  func.func @transform_3(%arg0: i32) -> (i32, i32) {
    %c0_i32 = arith.constant 0 : i32
    %c0_i32_0 = arith.constant 0 : i32
    %c0_i32_1 = arith.constant 0 : i32
    return %c0_i32, %c0_i32_0 : i32, i32
  }
  func.func @transform_4(%arg0: i32) -> (i32, i32) {
    %c0_i32 = arith.constant 0 : i32
    %c0_i32_0 = arith.constant 0 : i32
    %c0_i32_1 = arith.constant 0 : i32
    return %c0_i32, %c0_i32_0 : i32, i32
  }
  func.func @transform_5(%arg0: i32) -> (i32, i32, i32) {
    %c0_i32 = arith.constant 0 : i32
    %c0_i32_0 = arith.constant 0 : i32
    %c0_i32_1 = arith.constant 0 : i32
    return %arg0, %c0_i32, %c0_i32_0 : i32, i32, i32
  }
  func.func @transform_6(%arg0: i32) -> (i32, i32, i32) {
    %c0_i32 = arith.constant 0 : i32
    %c0_i32_0 = arith.constant 0 : i32
    %c0_i32_1 = arith.constant 0 : i32
    return %arg0, %c0_i32, %c0_i32_0 : i32, i32, i32
  }
}

</mosaic_0001>

<llo_original>
// kernel: g_transformer_forward.3
$region0: #{g_transformer_forward.3}
  #allocation0 [shape = 'u32[]', space=smem, size = 0x4, offset = 0x4, fixed_abs, tag = 'smem constant byte address 0x4 - core index']
  #allocation1 [shape = 'u32[144,128]{1,0:T(1,128)}', space=vmem, size = 0x12000, scoped, tag = 'internal scratch']
  %s0 = inlined_call_operand.vmem [shape: f32[2,8,16], index: 0, kind: input, shape index: {}]
  %s1 = inlined_call_operand.vmem [shape: f32[2,8,16], index: 1, kind: input, shape index: {}]
  %s2 = inlined_call_operand.vmem [shape: f32[8,1], index: 2, kind: input, shape index: {}]
  %s3 = inlined_call_operand.vmem [shape: f32[8,1], index: 3, kind: input, shape index: {}]
  %s4 = inlined_call_operand.hbm [shape: f32[2,8,16], index: 4, kind: output, shape index: {}]
  %s5 = sld [smem:[#allocation0]]
  $region49: #{g_transformer_forward.3} parent=0
    _
  %s7 = ssub.s32 1, %s5
  %s8 = scalar_select 0, %s7, %s5
  $region1: #{g_transformer_forward.3} parent=0
    #allocation2 [shape = 'u8[8192]{0}', space=vmem, size = 0x2000, scoped, tag = 'output window, operand 0']
    #allocation3 [shape = 's32[2]{0}', space=sflag, size = 0x8, scoped, tag = 'scoped memory for g_transformer_forward.3']
    %9 = vsyncpa [#allocation3], 0
    %s10 = scalar_lea.sflag [#allocation3], 1
    %11 = vsyncpa %s10, 0
    loop: start=0, step=1, limit=4
    $region2: #{g_transformer_forward.3} parent=1 // loop_pre_header
      _
    $region3: #{g_transformer_forward.3} parent=1 // loop_header
      %s13 = sphi 0, %s17
      %p14 = scmp.ge.s32.totalorder %s13, 4
      %s20 = sphi 0, %s32
      %s21 = sphi 0, %s28
      %s22 = sphi 0, %s20
      %s23 = sphi 0, %s21
      %s24 = sphi 0, %s22
      %s25 = sphi 0, %s23
      %s37 = sphi 0, %s39
      %s40 = sphi 0, %s37
      %s41 = sphi 0, %s40
      %s57 = sphi 0, %s41
      %s65 = sphi 0, %s67
      %s68 = sphi 0, %s65
      %s69 = sphi 0, %s68
      %s85 = sphi 0, %s69
      %s89 = sphi 0, %s89
      %s91 = sphi 0, %s89
      %s92 = sphi 0, %s91
      %s106 = sphi 0, %s92
      %s110 = sphi 0, %s110
      %s112 = sphi 0, %s110
      %s113 = sphi 0, %s112
      %s127 = sphi 0, %s113
      %s135 = sphi 0, %s137
      %s138 = sphi 0, %s135
      %s139 = sphi 0, %s138
      %s155 = sphi 0, %s139
    $region4: #{g_transformer_forward.3} parent=1 // loop_header_branch
      %16 = sbr.rel (%p14) target = $region8
    $region5: #{g_transformer_forward.3} parent=1 // loop_body
      %s18 = ssub.s32 %s13, 1
      %s19 = ssub.s32 %s13, 2
      %s26 = sadd.s32 1, %s21
      %p27 = scmp.ge.s32.totalorder %s26, 1
      %s28 = scalar_select %p27, 0, %s26
      %s29 = sadd.s32 1, %s20
      %s30 = scalar_select %p27, %s29, %s20
      %p31 = scmp.ge.s32.totalorder %s30, 2
      %s32 = scalar_select %p31, 0, %s30
      %s33 = ssub.s32 %s20, %s32
      %s34 = ssub.s32 %s21, %s28
      %s35 = sor.u32 %s33, %s34
      %p36 = scmp.eq.s32.totalorder %s35, 0
      %s38 = sadd.s32 %s37, 1
      %s39 = scalar_select %p36, %s37, %s38
      %p42 = pneg %p36
      %p43 = scmp.eq.s32.totalorder %s13, 1
      %p44 = por %p42, %p43
      %p45 = scmp.ne.s32.totalorder %s37, %s40
      %p46 = scmp.eq.s32.totalorder %s13, 0
      %p47 = por %p45, %p46
      %p48 = scmp.ne.s32.totalorder %s37, %s40
      %p49 = scmp.eq.s32.totalorder %s18, 1
      %p50 = por %p48, %p49
      %p51 = scmp.ne.s32.totalorder %s40, %s41
      %p52 = scmp.eq.s32.totalorder %s18, 0
      %p53 = por %p51, %p52
      %p54 = scmp.ne.s32.totalorder %s40, %s41
      %p55 = scmp.eq.s32.totalorder %s19, 1
      %p56 = por %p54, %p55
      %p58 = scmp.ne.s32.totalorder %s41, %s57
      %p59 = scmp.eq.s32.totalorder %s19, 0
      %p60 = por %p58, %p59
      %s61 = ssub.s32 %s20, %s32
      %s62 = ssub.s32 %s21, %s28
      %s63 = sor.u32 %s61, %s62
      %p64 = scmp.eq.s32.totalorder %s63, 0
      %s66 = sadd.s32 %s65, 1
      %s67 = scalar_select %p64, %s65, %s66
      %p70 = pneg %p64
      %p71 = scmp.eq.s32.totalorder %s13, 1
      %p72 = por %p70, %p71
      %p73 = scmp.ne.s32.totalorder %s65, %s68
      %p74 = scmp.eq.s32.totalorder %s13, 0
      %p75 = por %p73, %p74
      %p76 = scmp.ne.s32.totalorder %s65, %s68
      %p77 = scmp.eq.s32.totalorder %s18, 1
      %p78 = por %p76, %p77
      %p79 = scmp.ne.s32.totalorder %s68, %s69
      %p80 = scmp.eq.s32.totalorder %s18, 0
      %p81 = por %p79, %p80
      %p82 = scmp.ne.s32.totalorder %s68, %s69
      %p83 = scmp.eq.s32.totalorder %s19, 1
      %p84 = por %p82, %p83
      %p86 = scmp.ne.s32.totalorder %s69, %s85
      %p87 = scmp.eq.s32.totalorder %s19, 0
      %p88 = por %p86, %p87
      %s90 = sadd.s32 %s89, 1
      %p93 = scmp.eq.s32.totalorder %s13, 1
      %p94 = scmp.ne.s32.totalorder %s89, %s91
      %p95 = scmp.eq.s32.totalorder %s13, 0
      %p96 = por %p94, %p95
      %p97 = scmp.ne.s32.totalorder %s89, %s91
      %p98 = scmp.eq.s32.totalorder %s18, 1
      %p99 = por %p97, %p98
      %p100 = scmp.ne.s32.totalorder %s91, %s92
      %p101 = scmp.eq.s32.totalorder %s18, 0
      %p102 = por %p100, %p101
      %p103 = scmp.ne.s32.totalorder %s91, %s92
      %p104 = scmp.eq.s32.totalorder %s19, 1
      %p105 = por %p103, %p104
      %p107 = scmp.ne.s32.totalorder %s92, %s106
      %p108 = scmp.eq.s32.totalorder %s19, 0
      %p109 = por %p107, %p108
      %s111 = sadd.s32 %s110, 1
      %p114 = scmp.eq.s32.totalorder %s13, 1
      %p115 = scmp.ne.s32.totalorder %s110, %s112
      %p116 = scmp.eq.s32.totalorder %s13, 0
      %p117 = por %p115, %p116
      %p118 = scmp.ne.s32.totalorder %s110, %s112
      %p119 = scmp.eq.s32.totalorder %s18, 1
      %p120 = por %p118, %p119
      %p121 = scmp.ne.s32.totalorder %s112, %s113
      %p122 = scmp.eq.s32.totalorder %s18, 0
      %p123 = por %p121, %p122
      %p124 = scmp.ne.s32.totalorder %s112, %s113
      %p125 = scmp.eq.s32.totalorder %s19, 1
      %p126 = por %p124, %p125
      %p128 = scmp.ne.s32.totalorder %s113, %s127
      %p129 = scmp.eq.s32.totalorder %s19, 0
      %p130 = por %p128, %p129
      %s131 = ssub.s32 %s20, %s32
      %s132 = ssub.s32 %s21, %s28
      %s133 = sor.u32 %s131, %s132
      %p134 = scmp.eq.s32.totalorder %s133, 0
      %s136 = sadd.s32 %s135, 1
      %s137 = scalar_select %p134, %s135, %s136
      %p140 = pneg %p134
      %p141 = scmp.eq.s32.totalorder %s13, 1
      %p142 = por %p140, %p141
      %p143 = scmp.ne.s32.totalorder %s135, %s138
      %p144 = scmp.eq.s32.totalorder %s13, 0
      %p145 = por %p143, %p144
      %p146 = scmp.ne.s32.totalorder %s135, %s138
      %p147 = scmp.eq.s32.totalorder %s18, 1
      %p148 = por %p146, %p147
      %p149 = scmp.ne.s32.totalorder %s138, %s139
      %p150 = scmp.eq.s32.totalorder %s18, 0
      %p151 = por %p149, %p150
      %p152 = scmp.ne.s32.totalorder %s138, %s139
      %p153 = scmp.eq.s32.totalorder %s19, 1
      %p154 = por %p152, %p153
      %p156 = scmp.ne.s32.totalorder %s139, %s155
      %p157 = scmp.eq.s32.totalorder %s19, 0
      %p158 = por %p156, %p157
      %p159 = scmp.le.s32.totalorder 1, %s13
      %p160 = scmp.lt.s32.totalorder %s13, 3
      %p161 = pnand %p159, %p160
      %p162 = pneg %p161
      // Predicated region
      $region9: #{g_transformer_forward.3} parent=5 // pred_check
        _
      $region10: #{g_transformer_forward.3} parent=5 // pred_check_branch
        %164 = sbr.rel (%p161) target = $region12
      $region11: #{g_transformer_forward.3} parent=5 // pred_region
        %s165 = ssub.s32 %s13, 1
        // Predicated region
        $region13: #{g_transformer_forward.3} parent=11 // pred_check
          %p166 = pneg %p102
        $region14: #{g_transformer_forward.3} parent=11 // pred_check_branch
          %168 = sbr.rel (%p166) target = $region16
        $region15: #{g_transformer_forward.3} parent=11 // pred_region
          _
        $region16: #{g_transformer_forward.3} parent=11 // pred_fallthru
          _
        // Predicated region
        $region17: #{g_transformer_forward.3} parent=11 // pred_check
          %p169 = pneg %p123
        $region18: #{g_transformer_forward.3} parent=11 // pred_check_branch
          %171 = sbr.rel (%p169) target = $region20
        $region19: #{g_transformer_forward.3} parent=11 // pred_region
          _
        $region20: #{g_transformer_forward.3} parent=11 // pred_fallthru
          _
      $region12: #{g_transformer_forward.3} parent=5 // pred_fallthru
        _
      %p172 = scmp.lt.s32.totalorder %s13, 2
      // Predicated region
      $region21: #{g_transformer_forward.3} parent=5 // pred_check
        %p173 = pneg %p172
      $region22: #{g_transformer_forward.3} parent=5 // pred_check_branch
        %175 = sbr.rel (%p173) target = $region24
      $region23: #{g_transformer_forward.3} parent=5 // pred_region
        // Predicated region
        $region25: #{g_transformer_forward.3} parent=23 // pred_check
          %p176 = pneg %p47
        $region26: #{g_transformer_forward.3} parent=23 // pred_check_branch
          %178 = sbr.rel (%p176) target = $region28
        $region27: #{g_transformer_forward.3} parent=23 // pred_region
          %p179 = scmp.lt.s32.totalorder %s20, 1
          %s180 = scalar_select %p179, %s20, 1
          %p181 = scmp.lt.s32.totalorder %s21, 0
          %s182 = scalar_select %p181, %s21, 0
          %s183 = sadd.s32 %s182, %s180
          %s184 = smul.addr %s183, 8
          %s185 = scalar_lea.vmem %s0, %s184
        $region28: #{g_transformer_forward.3} parent=23 // pred_fallthru
          _
        // Predicated region
        $region29: #{g_transformer_forward.3} parent=23 // pred_check
          %p186 = pneg %p75
        $region30: #{g_transformer_forward.3} parent=23 // pred_check_branch
          %188 = sbr.rel (%p186) target = $region32
        $region31: #{g_transformer_forward.3} parent=23 // pred_region
          %p189 = scmp.lt.s32.totalorder %s20, 1
          %s190 = scalar_select %p189, %s20, 1
          %p191 = scmp.lt.s32.totalorder %s21, 0
          %s192 = scalar_select %p191, %s21, 0
          %s193 = sadd.s32 %s192, %s190
          %s194 = smul.addr %s193, 8
          %s195 = scalar_lea.vmem %s1, %s194
        $region32: #{g_transformer_forward.3} parent=23 // pred_fallthru
          _
      $region24: #{g_transformer_forward.3} parent=5 // pred_fallthru
        _
      %p196 = scmp.le.s32.totalorder 1, %s13
      %p197 = scmp.lt.s32.totalorder %s13, 3
      %p198 = pnand %p196, %p197
      %p199 = pneg %p198
      // Predicated region
      $region33: #{g_transformer_forward.3} parent=5 // pred_check
        _
      $region34: #{g_transformer_forward.3} parent=5 // pred_check_branch
        %201 = sbr.rel (%p198) target = $region36
      $region35: #{g_transformer_forward.3} parent=5 // pred_region
        %s202 = ssub.s32 %s13, 1
        %p203 = scmp.lt.s32.totalorder %s22, 1
        %s204 = scalar_select %p203, %s22, 1
        %p205 = scmp.lt.s32.totalorder %s23, 0
        %s206 = scalar_select %p205, %s23, 0
        %s207 = sadd.s32 %s206, %s204
        %s208 = smul.addr %s207, 8
        %s209 = scalar_lea.vmem %s0, %s208
        %p210 = pneg %p53
        %p211 = pneg %p50
        %p212 = scmp.lt.s32.totalorder %s22, 1
        %s213 = scalar_select %p212, %s22, 1
        %p214 = scmp.lt.s32.totalorder %s23, 0
        %s215 = scalar_select %p214, %s23, 0
        %s216 = sadd.s32 %s215, %s213
        %s217 = smul.addr %s216, 8
        %s218 = scalar_lea.vmem %s1, %s217
        %p219 = pneg %p81
        %p220 = pneg %p78
        %p221 = pneg %p102
        %p222 = pneg %p99
        %p223 = pneg %p123
        %p224 = pneg %p120
        %p225 = pneg %p151
        %p226 = pneg %p148
        %s227 = sand.u32 %s138, 1
        %s228 = scalar_lea.sflag [#allocation3], %s227
        %s229 = sand.u32 %s138, 1
        %s230 = smul.addr %s229, 8
        %s231 = scalar_lea.vmem [#allocation2], %s230
        %p232 = scmp.lt.s32.totalorder %s22, 1
        %s233 = scalar_select %p232, %s22, 1
        %p234 = scmp.lt.s32.totalorder %s23, 0
        %s235 = scalar_select %p234, %s23, 0
        %s236 = sadd.s32 %s235, %s233
        %s237 = smul.addr %s236, 8
        %s238 = scalar_lea.vmem %s0, %s237
        %p239 = scmp.lt.s32.totalorder %s22, 1
        %s240 = scalar_select %p239, %s22, 1
        %p241 = scmp.lt.s32.totalorder %s23, 0
        %s242 = scalar_select %p241, %s23, 0
        %s243 = sadd.s32 %s242, %s240
        %s244 = smul.addr %s243, 8
        %s245 = scalar_lea.vmem %s1, %s244
        %v246 = vld [vmem:[%s245] sm:$0xff]
        %v247 = vld [vmem:[%s2] sm:$0xff]
        %249 = vset.pattern.permute.xlu0 0
        %250 = vperm.xlu0 %249, %v247
        %v251 = vpop.permute.xlu0 %250
        %v253 = vmul.f32 %v246, %v251
        %v254 = vld [vmem:[%s3] sm:$0xff]
        %256 = vset.pattern.permute.xlu0 0
        %257 = vperm.xlu0 %256, %v254
        %v258 = vpop.permute.xlu0 %257
        %v260 = vadd.f32 %v253, %v258
        %v261 = vld [vmem:[%s238] sm:$0xff]
        %v262 = vmax.f32 %v260, 0.0
        %v263 = vadd.f32 %v261, %v262
        %vm264 = vcmask 130048
        %265 = vst.msk [vmem:[%s231] sm:$0xff] %vm264, %v263
        %s266 = sand.u32 %s138, 1
        %s267 = scalar_lea.sflag [#allocation3], %s266
        %s268 = sand.u32 %s138, 1
        %s269 = smul.addr %s268, 8
        %s270 = scalar_lea.vmem [#allocation2], %s269
        // Predicated region
        $region37: #{g_transformer_forward.3} parent=35 // pred_check
          %p271 = pneg %p148
        $region38: #{g_transformer_forward.3} parent=35 // pred_check_branch
          %273 = sbr.rel (%p271) target = $region40
        $region39: #{g_transformer_forward.3} parent=35 // pred_region
          %s275 = ssub.s32 128, 128
          %276 = vsyncadd %s267, %s275
          %s277 = sadd.s32 %s23, %s22
          %s278 = smul.addr %s277, 128
          %s279 = scalar_lea.hbm %s4, %s278
          %s281 = sshll.u32 %s270, 4
          %s282 = int_to_ptr.vmem [resolvable:$true] %s281
          %284 = dma.vmem_to_hbm [thread:$0]  %s282, 128, %s279, %s267
        $region40: #{g_transformer_forward.3} parent=35 // pred_fallthru
          _
      $region36: #{g_transformer_forward.3} parent=5 // pred_fallthru
        _
      %p285 = scmp.le.s32.totalorder 2, %s13
      // Predicated region
      $region41: #{g_transformer_forward.3} parent=5 // pred_check
        %p286 = pneg %p285
      $region42: #{g_transformer_forward.3} parent=5 // pred_check_branch
        %288 = sbr.rel (%p286) target = $region44
      $region43: #{g_transformer_forward.3} parent=5 // pred_region
        %s289 = ssub.s32 %s13, 2
        // Predicated region
        $region45: #{g_transformer_forward.3} parent=43 // pred_check
          %p290 = pneg %p154
        $region46: #{g_transformer_forward.3} parent=43 // pred_check_branch
          %292 = sbr.rel (%p290) target = $region48
        $region47: #{g_transformer_forward.3} parent=43 // pred_region
          %s293 = sand.u32 %s139, 1
          %s294 = scalar_lea.sflag [#allocation3], %s293
          %s295 = sand.u32 %s139, 1
          %s296 = smul.addr %s295, 8
          %s297 = scalar_lea.vmem [#allocation2], %s296
          %298 = dma.done %s294, 128
        $region48: #{g_transformer_forward.3} parent=43 // pred_fallthru
          _
      $region44: #{g_transformer_forward.3} parent=5 // pred_fallthru
        _
    $region6: #{g_transformer_forward.3} parent=1 // loop_footer
      %s17 = sadd.s32 1, %s13
    $region7: #{g_transformer_forward.3} parent=1 // loop_footer_branch
      %12 = sbr.rel target = $region3
    $region8: #{g_transformer_forward.3} parent=1 // loop_exit
      _
    %299 = vsyncpa [#allocation3], 1
    %s300 = scalar_lea.sflag [#allocation3], 1
    %301 = vsyncpa %s300, 1

// kernel: g_transformer_forward.2
$region0: #{g_transformer_forward.2}
  #allocation0 [shape = 'u32[]', space=smem, size = 0x4, offset = 0x4, fixed_abs, tag = 'smem constant byte address 0x4 - core index']
  #allocation1 [shape = 'u32[144,128]{1,0:T(1,128)}', space=vmem, size = 0x12000, scoped, tag = 'internal scratch']
  %s0 = inlined_call_operand.vmem [shape: f32[2,8,16], index: 0, kind: input, shape index: {}]
  %s1 = inlined_call_operand.vmem [shape: f32[24,8], index: 1, kind: input, shape index: {}]
  %s2 = inlined_call_operand.vmem [shape: f32[8,8], index: 2, kind: input, shape index: {}]
  %s3 = inlined_call_operand.vmem [shape: f32[8,1], index: 3, kind: input, shape index: {}]
  %s4 = inlined_call_operand.vmem [shape: f32[8,1], index: 4, kind: input, shape index: {}]
  %s5 = inlined_call_operand.vmem [shape: f32[2,8,16], index: 5, kind: output, shape index: {0}]
  %s6 = inlined_call_operand.vmem [shape: f32[2,8,3], index: 6, kind: output, shape index: {1}]
  %7 = xla_tuple %s5, %s6
  %s8 = sld [smem:[#allocation0]]
  $region61: #{g_transformer_forward.2} parent=0
    _
  %s10 = ssub.s32 1, %s8
  %s11 = scalar_select 0, %s10, %s8
  loop: start=0, step=1, limit=4
  $region2: #{g_transformer_forward.2} parent=0 // loop_pre_header
    _
  $region3: #{g_transformer_forward.2} parent=0 // loop_header
    %s13 = sphi 0, %s17
    %p14 = scmp.ge.s32.totalorder %s13, 4
    %s23 = sphi 0, %s25
    %s26 = sphi 0, %s23
    %s27 = sphi 0, %s26
    %s43 = sphi 0, %s27
    %s47 = sphi 0, %s47
    %s49 = sphi 0, %s47
    %s50 = sphi 0, %s49
    %s64 = sphi 0, %s50
    %s68 = sphi 0, %s68
    %s70 = sphi 0, %s68
    %s71 = sphi 0, %s70
    %s85 = sphi 0, %s71
    %s89 = sphi 0, %s89
    %s91 = sphi 0, %s89
    %s92 = sphi 0, %s91
    %s106 = sphi 0, %s92
    %s110 = sphi 0, %s110
    %s112 = sphi 0, %s110
    %s113 = sphi 0, %s112
    %s127 = sphi 0, %s113
    %s133 = sphi 0, %s135
    %s136 = sphi 0, %s133
    %s137 = sphi 0, %s136
    %s153 = sphi 0, %s137
    %s159 = sphi 0, %s161
    %s162 = sphi 0, %s159
    %s163 = sphi 0, %s162
    %s179 = sphi 0, %s163
  $region4: #{g_transformer_forward.2} parent=0 // loop_header_branch
    %16 = sbr.rel (%p14) target = $region8
  $region5: #{g_transformer_forward.2} parent=0 // loop_body
    %s18 = ssub.s32 %s13, 1
    %s19 = ssub.s32 %s13, 2
    %s20 = sadd.s32 %s13, 1
    %s21 = ssub.s32 %s13, %s20
    %p22 = scmp.eq.s32.totalorder %s21, 0
    %s24 = sadd.s32 %s23, 1
    %s25 = scalar_select %p22, %s23, %s24
    %p28 = pneg %p22
    %p29 = scmp.eq.s32.totalorder %s13, 1
    %p30 = por %p28, %p29
    %p31 = scmp.ne.s32.totalorder %s23, %s26
    %p32 = scmp.eq.s32.totalorder %s13, 0
    %p33 = por %p31, %p32
    %p34 = scmp.ne.s32.totalorder %s23, %s26
    %p35 = scmp.eq.s32.totalorder %s18, 1
    %p36 = por %p34, %p35
    %p37 = scmp.ne.s32.totalorder %s26, %s27
    %p38 = scmp.eq.s32.totalorder %s18, 0
    %p39 = por %p37, %p38
    %p40 = scmp.ne.s32.totalorder %s26, %s27
    %p41 = scmp.eq.s32.totalorder %s19, 1
    %p42 = por %p40, %p41
    %p44 = scmp.ne.s32.totalorder %s27, %s43
    %p45 = scmp.eq.s32.totalorder %s19, 0
    %p46 = por %p44, %p45
    %s48 = sadd.s32 %s47, 1
    %p51 = scmp.eq.s32.totalorder %s13, 1
    %p52 = scmp.ne.s32.totalorder %s47, %s49
    %p53 = scmp.eq.s32.totalorder %s13, 0
    %p54 = por %p52, %p53
    %p55 = scmp.ne.s32.totalorder %s47, %s49
    %p56 = scmp.eq.s32.totalorder %s18, 1
    %p57 = por %p55, %p56
    %p58 = scmp.ne.s32.totalorder %s49, %s50
    %p59 = scmp.eq.s32.totalorder %s18, 0
    %p60 = por %p58, %p59
    %p61 = scmp.ne.s32.totalorder %s49, %s50
    %p62 = scmp.eq.s32.totalorder %s19, 1
    %p63 = por %p61, %p62
    %p65 = scmp.ne.s32.totalorder %s50, %s64
    %p66 = scmp.eq.s32.totalorder %s19, 0
    %p67 = por %p65, %p66
    %s69 = sadd.s32 %s68, 1
    %p72 = scmp.eq.s32.totalorder %s13, 1
    %p73 = scmp.ne.s32.totalorder %s68, %s70
    %p74 = scmp.eq.s32.totalorder %s13, 0
    %p75 = por %p73, %p74
    %p76 = scmp.ne.s32.totalorder %s68, %s70
    %p77 = scmp.eq.s32.totalorder %s18, 1
    %p78 = por %p76, %p77
    %p79 = scmp.ne.s32.totalorder %s70, %s71
    %p80 = scmp.eq.s32.totalorder %s18, 0
    %p81 = por %p79, %p80
    %p82 = scmp.ne.s32.totalorder %s70, %s71
    %p83 = scmp.eq.s32.totalorder %s19, 1
    %p84 = por %p82, %p83
    %p86 = scmp.ne.s32.totalorder %s71, %s85
    %p87 = scmp.eq.s32.totalorder %s19, 0
    %p88 = por %p86, %p87
    %s90 = sadd.s32 %s89, 1
    %p93 = scmp.eq.s32.totalorder %s13, 1
    %p94 = scmp.ne.s32.totalorder %s89, %s91
    %p95 = scmp.eq.s32.totalorder %s13, 0
    %p96 = por %p94, %p95
    %p97 = scmp.ne.s32.totalorder %s89, %s91
    %p98 = scmp.eq.s32.totalorder %s18, 1
    %p99 = por %p97, %p98
    %p100 = scmp.ne.s32.totalorder %s91, %s92
    %p101 = scmp.eq.s32.totalorder %s18, 0
    %p102 = por %p100, %p101
    %p103 = scmp.ne.s32.totalorder %s91, %s92
    %p104 = scmp.eq.s32.totalorder %s19, 1
    %p105 = por %p103, %p104
    %p107 = scmp.ne.s32.totalorder %s92, %s106
    %p108 = scmp.eq.s32.totalorder %s19, 0
    %p109 = por %p107, %p108
    %s111 = sadd.s32 %s110, 1
    %p114 = scmp.eq.s32.totalorder %s13, 1
    %p115 = scmp.ne.s32.totalorder %s110, %s112
    %p116 = scmp.eq.s32.totalorder %s13, 0
    %p117 = por %p115, %p116
    %p118 = scmp.ne.s32.totalorder %s110, %s112
    %p119 = scmp.eq.s32.totalorder %s18, 1
    %p120 = por %p118, %p119
    %p121 = scmp.ne.s32.totalorder %s112, %s113
    %p122 = scmp.eq.s32.totalorder %s18, 0
    %p123 = por %p121, %p122
    %p124 = scmp.ne.s32.totalorder %s112, %s113
    %p125 = scmp.eq.s32.totalorder %s19, 1
    %p126 = por %p124, %p125
    %p128 = scmp.ne.s32.totalorder %s113, %s127
    %p129 = scmp.eq.s32.totalorder %s19, 0
    %p130 = por %p128, %p129
    %s131 = ssub.s32 %s13, %s20
    %p132 = scmp.eq.s32.totalorder %s131, 0
    %s134 = sadd.s32 %s133, 1
    %s135 = scalar_select %p132, %s133, %s134
    %p138 = pneg %p132
    %p139 = scmp.eq.s32.totalorder %s13, 1
    %p140 = por %p138, %p139
    %p141 = scmp.ne.s32.totalorder %s133, %s136
    %p142 = scmp.eq.s32.totalorder %s13, 0
    %p143 = por %p141, %p142
    %p144 = scmp.ne.s32.totalorder %s133, %s136
    %p145 = scmp.eq.s32.totalorder %s18, 1
    %p146 = por %p144, %p145
    %p147 = scmp.ne.s32.totalorder %s136, %s137
    %p148 = scmp.eq.s32.totalorder %s18, 0
    %p149 = por %p147, %p148
    %p150 = scmp.ne.s32.totalorder %s136, %s137
    %p151 = scmp.eq.s32.totalorder %s19, 1
    %p152 = por %p150, %p151
    %p154 = scmp.ne.s32.totalorder %s137, %s153
    %p155 = scmp.eq.s32.totalorder %s19, 0
    %p156 = por %p154, %p155
    %s157 = ssub.s32 %s13, %s20
    %p158 = scmp.eq.s32.totalorder %s157, 0
    %s160 = sadd.s32 %s159, 1
    %s161 = scalar_select %p158, %s159, %s160
    %p164 = pneg %p158
    %p165 = scmp.eq.s32.totalorder %s13, 1
    %p166 = por %p164, %p165
    %p167 = scmp.ne.s32.totalorder %s159, %s162
    %p168 = scmp.eq.s32.totalorder %s13, 0
    %p169 = por %p167, %p168
    %p170 = scmp.ne.s32.totalorder %s159, %s162
    %p171 = scmp.eq.s32.totalorder %s18, 1
    %p172 = por %p170, %p171
    %p173 = scmp.ne.s32.totalorder %s162, %s163
    %p174 = scmp.eq.s32.totalorder %s18, 0
    %p175 = por %p173, %p174
    %p176 = scmp.ne.s32.totalorder %s162, %s163
    %p177 = scmp.eq.s32.totalorder %s19, 1
    %p178 = por %p176, %p177
    %p180 = scmp.ne.s32.totalorder %s163, %s179
    %p181 = scmp.eq.s32.totalorder %s19, 0
    %p182 = por %p180, %p181
    %p183 = scmp.le.s32.totalorder 1, %s13
    %p184 = scmp.lt.s32.totalorder %s13, 3
    %p185 = pnand %p183, %p184
    %p186 = pneg %p185
    // Predicated region
    $region9: #{g_transformer_forward.2} parent=5 // pred_check
      _
    $region10: #{g_transformer_forward.2} parent=5 // pred_check_branch
      %188 = sbr.rel (%p185) target = $region12
    $region11: #{g_transformer_forward.2} parent=5 // pred_region
      %s189 = ssub.s32 %s13, 1
      // Predicated region
      $region13: #{g_transformer_forward.2} parent=11 // pred_check
        %p190 = pneg %p60
      $region14: #{g_transformer_forward.2} parent=11 // pred_check_branch
        %192 = sbr.rel (%p190) target = $region16
      $region15: #{g_transformer_forward.2} parent=11 // pred_region
        _
      $region16: #{g_transformer_forward.2} parent=11 // pred_fallthru
        _
      // Predicated region
      $region17: #{g_transformer_forward.2} parent=11 // pred_check
        %p193 = pneg %p81
      $region18: #{g_transformer_forward.2} parent=11 // pred_check_branch
        %195 = sbr.rel (%p193) target = $region20
      $region19: #{g_transformer_forward.2} parent=11 // pred_region
        _
      $region20: #{g_transformer_forward.2} parent=11 // pred_fallthru
        _
      // Predicated region
      $region21: #{g_transformer_forward.2} parent=11 // pred_check
        %p196 = pneg %p102
      $region22: #{g_transformer_forward.2} parent=11 // pred_check_branch
        %198 = sbr.rel (%p196) target = $region24
      $region23: #{g_transformer_forward.2} parent=11 // pred_region
        _
      $region24: #{g_transformer_forward.2} parent=11 // pred_fallthru
        _
      // Predicated region
      $region25: #{g_transformer_forward.2} parent=11 // pred_check
        %p199 = pneg %p123
      $region26: #{g_transformer_forward.2} parent=11 // pred_check_branch
        %201 = sbr.rel (%p199) target = $region28
      $region27: #{g_transformer_forward.2} parent=11 // pred_region
        _
      $region28: #{g_transformer_forward.2} parent=11 // pred_fallthru
        _
    $region12: #{g_transformer_forward.2} parent=5 // pred_fallthru
      _
    %p202 = scmp.lt.s32.totalorder %s13, 2
    // Predicated region
    $region29: #{g_transformer_forward.2} parent=5 // pred_check
      %p203 = pneg %p202
    $region30: #{g_transformer_forward.2} parent=5 // pred_check_branch
      %205 = sbr.rel (%p203) target = $region32
    $region31: #{g_transformer_forward.2} parent=5 // pred_region
      // Predicated region
      $region33: #{g_transformer_forward.2} parent=31 // pred_check
        %p206 = pneg %p33
      $region34: #{g_transformer_forward.2} parent=31 // pred_check_branch
        %208 = sbr.rel (%p206) target = $region36
      $region35: #{g_transformer_forward.2} parent=31 // pred_region
        %p209 = scmp.lt.s32.totalorder %s13, 1
        %s210 = scalar_select %p209, %s13, 1
        %s211 = smul.addr %s210, 8
        %s212 = scalar_lea.vmem %s0, %s211
      $region36: #{g_transformer_forward.2} parent=31 // pred_fallthru
        _
    $region32: #{g_transformer_forward.2} parent=5 // pred_fallthru
      _
    %p213 = scmp.le.s32.totalorder 1, %s13
    %p214 = scmp.lt.s32.totalorder %s13, 3
    %p215 = pnand %p213, %p214
    %p216 = pneg %p215
    // Predicated region
    $region37: #{g_transformer_forward.2} parent=5 // pred_check
      _
    $region38: #{g_transformer_forward.2} parent=5 // pred_check_branch
      %218 = sbr.rel (%p215) target = $region40
    $region39: #{g_transformer_forward.2} parent=5 // pred_region
      %s219 = ssub.s32 %s13, 1
      %p220 = scmp.lt.s32.totalorder %s18, 1
      %s221 = scalar_select %p220, %s18, 1
      %s222 = smul.addr %s221, 8
      %s223 = scalar_lea.vmem %s0, %s222
      %p224 = pneg %p39
      %p225 = pneg %p36
      %p226 = pneg %p60
      %p227 = pneg %p57
      %p228 = pneg %p81
      %p229 = pneg %p78
      %p230 = pneg %p102
      %p231 = pneg %p99
      %p232 = pneg %p123
      %p233 = pneg %p120
      %p234 = pneg %p149
      %p235 = pneg %p146
      %p236 = scmp.lt.s32.totalorder %s18, 1
      %s237 = scalar_select %p236, %s18, 1
      %s238 = smul.addr %s237, 8
      %s239 = scalar_lea.vmem %s5, %s238
      %p240 = pneg %p175
      %p241 = pneg %p172
      %p242 = scmp.lt.s32.totalorder %s18, 1
      %s243 = scalar_select %p242, %s18, 1
      %s244 = smul.addr %s243, 8
      %s245 = scalar_lea.vmem %s6, %s244
      %p246 = scmp.lt.s32.totalorder %s18, 1
      %s247 = scalar_select %p246, %s18, 1
      %s248 = smul.addr %s247, 8
      %s249 = scalar_lea.vmem %s0, %s248
      %p250 = scmp.lt.s32.totalorder %s18, 1
      %s251 = scalar_select %p250, %s18, 1
      %s252 = smul.addr %s251, 8
      %s253 = scalar_lea.vmem %s5, %s252
      %p254 = scmp.lt.s32.totalorder %s18, 1
      %s255 = scalar_select %p254, %s18, 1
      %s256 = smul.addr %s255, 8
      %s257 = scalar_lea.vmem %s6, %s256
      %v258 = vld [vmem:[%s249] sm:$0xff]
      %v259 = vld [vmem:[%s1] sm:$0xff]
      %v260 = vld [vmem:[%s1 + $0x8] sm:$0xff]
      %v261 = vld [vmem:[%s1 + $0x10] sm:$0xff]
      %vm262 = vcmask 64512
      %v264 = vsel %vm262, %v259, 0
      %v267 = vsel %vm262, %v260, 0
      %v270 = vsel %vm262, %v261, 0
      %272 = vmatprep.subr.mxu0 0.0
      %273 = vmatpush1.msra.mxu0 0.0
      %274 = vmatprep.subr.mxu0 0.0
      %275 = vmatpush1.msra.mxu0 0.0
      %276 = vmatprep.subr.mxu0 0.0
      %277 = vmatpush1.msra.mxu0 0.0
      %278 = vmatprep.subr.mxu0 0.0
      %279 = vmatpush1.msra.mxu0 0.0
      %280 = vmatprep.subr.mxu0 0.0
      %281 = vmatpush1.msra.mxu0 0.0
      %282 = vmatprep.subr.mxu0 0.0
      %283 = vmatpush1.msra.mxu0 0.0
      %284 = vmatprep.subr.mxu0 0.0
      %285 = vmatpush1.msra.mxu0 0.0
      %286 = vmatprep.subr.mxu0 0.0
      %287 = vmatpush1.msra.mxu0 0.0
      %288 = vmatprep.subr.mxu0 0.0
      %289 = vmatpush1.msra.mxu0 0.0
      %290 = vmatprep.subr.mxu0 0.0
      %291 = vmatpush1.msra.mxu0 0.0
      %292 = vmatprep.subr.mxu0 0.0
      %293 = vmatpush1.msra.mxu0 0.0
      %294 = vmatprep.subr.mxu0 0.0
      %295 = vmatpush1.msra.mxu0 0.0
      %296 = vmatprep.subr.mxu0 0.0
      %297 = vmatpush1.msra.mxu0 0.0
      %298 = vmatprep.subr.mxu0 0.0
      %299 = vmatpush1.msra.mxu0 0.0
      %300 = vmatprep.subr.mxu0 0.0
      %301 = vmatpush1.msra.mxu0 0.0
      %302 = vmatprep.subr.mxu0 0.0
      %303 = vmatpush1.msra.mxu0 %v258
      %304 = vmatprep.subr.mxu0 0.0
      %305 = vmatpush2.msra.mxu0 0.0
      %306 = vmatprep.subr.mxu0 0.0
      %307 = vmatpush2.msra.mxu0 0.0
      %308 = vmatprep.subr.mxu0 0.0
      %309 = vmatpush2.msra.mxu0 0.0
      %310 = vmatprep.subr.mxu0 0.0
      %311 = vmatpush2.msra.mxu0 0.0
      %312 = vmatprep.subr.mxu0 0.0
      %313 = vmatpush2.msra.mxu0 0.0
      %314 = vmatprep.subr.mxu0 0.0
      %315 = vmatpush2.msra.mxu0 0.0
      %316 = vmatprep.subr.mxu0 0.0
      %317 = vmatpush2.msra.mxu0 0.0
      %318 = vmatprep.subr.mxu0 0.0
      %319 = vmatpush2.msra.mxu0 0.0
      %320 = vmatprep.subr.mxu0 0.0
      %321 = vmatpush2.msra.mxu0 0.0
      %322 = vmatprep.subr.mxu0 0.0
      %323 = vmatpush2.msra.mxu0 0.0
      %324 = vmatprep.subr.mxu0 0.0
      %325 = vmatpush2.msra.mxu0 0.0
      %326 = vmatprep.subr.mxu0 0.0
      %327 = vmatpush2.msra.mxu0 0.0
      %328 = vmatprep.subr.mxu0 0.0
      %329 = vmatpush2.msra.mxu0 0.0
      %330 = vmatprep.subr.mxu0 0.0
      %331 = vmatpush2.msra.mxu0 0.0
      %332 = vmatprep.subr.mxu0 0.0
      %333 = vmatpush2.msra.mxu0 0.0
      %334 = vmatprep.subr.mxu0 0.0
      %335 = vmatpush2.msra.mxu0 0.0
      %336 = vmatprep.mubr.f32.mxu0 0.0
      %337 = vmatmul.mubr.f32.gmra.mxu0 %v264
      %v338 = vpop.f32.mrf.mxu0
      %v339 = vadd.f32 0.0, %v338
      %v340 = vpop.f32.mrf.mxu0
      %341 = vmatprep.mubr.f32.mxu0 0.0
      %342 = vmatmul.mubr.f32.gmra.mxu0 %v267
      %v343 = vpop.f32.mrf.mxu0
      %v344 = vadd.f32 0.0, %v343
      %v345 = vpop.f32.mrf.mxu0
      %346 = vmatprep.mubr.f32.mxu0 0.0
      %347 = vmatmul.mubr.f32.gmra.mxu0 %v270
      %v348 = vpop.f32.mrf.mxu0
      %v349 = vadd.f32 0.0, %v348
      %v350 = vpop.f32.mrf.mxu0
      %351 = vdwg.mxu0
      %v352 = vld [vmem:[%s3] sm:$0xff]
      %354 = vset.pattern.permute.xlu0 0
      %355 = vperm.xlu0 %354, %v352
      %v356 = vpop.permute.xlu0 %355
      %v358 = vadd.f32 %v344, %v356
      %359 = vxpose.xlu0.b32.start [1/16] %v258, 128
      %360 = vxpose.xlu0.b32.cont [2/16] 0.0, 128
      %361 = vxpose.xlu0.b32.cont [3/16] 0.0, 128
      %362 = vxpose.xlu0.b32.cont [4/16] 0.0, 128
      %363 = vxpose.xlu0.b32.cont [5/16] 0.0, 128
      %364 = vxpose.xlu0.b32.cont [6/16] 0.0, 128
      %365 = vxpose.xlu0.b32.cont [7/16] 0.0, 128
      %366 = vxpose.xlu0.b32.cont [8/16] 0.0, 128
      %367 = vxpose.xlu0.b32.cont [9/16] 0.0, 128
      %368 = vxpose.xlu0.b32.cont [10/16] 0.0, 128
      %369 = vxpose.xlu0.b32.cont [11/16] 0.0, 128
      %370 = vxpose.xlu0.b32.cont [12/16] 0.0, 128
      %371 = vxpose.xlu0.b32.cont [13/16] 0.0, 128
      %372 = vxpose.xlu0.b32.cont [14/16] 0.0, 128
      %373 = vxpose.xlu0.b32.cont [15/16] 0.0, 128
      %374 = vxpose.xlu0.b32.end [16/16] 0.0, 128
      %v375 = vpop.trf.xlu0
      %v376 = vpop.trf.xlu0
      %v377 = vpop.trf.xlu0
      %v378 = vpop.trf.xlu0
      %v379 = vpop.trf.xlu0
      %v380 = vpop.trf.xlu0
      %v381 = vpop.trf.xlu0
      %v382 = vpop.trf.xlu0
      %v383 = vpop.trf.xlu0
      %v384 = vpop.trf.xlu0
      %v385 = vpop.trf.xlu0
      %v386 = vpop.trf.xlu0
      %v387 = vpop.trf.xlu0
      %v388 = vpop.trf.xlu0
      %v389 = vpop.trf.xlu0
      %v390 = vpop.trf.xlu0
      %v392 = vsel %vm262, %v375, 0
      %v395 = vsel %vm262, %v376, 0
      %397 = vmatprep.subr.mxu0 0.0
      %398 = vmatpush1.msra.mxu0 0.0
      %399 = vmatprep.subr.mxu0 0.0
      %400 = vmatpush1.msra.mxu0 0.0
      %401 = vmatprep.subr.mxu0 0.0
      %402 = vmatpush1.msra.mxu0 0.0
      %403 = vmatprep.subr.mxu0 0.0
      %404 = vmatpush1.msra.mxu0 0.0
      %405 = vmatprep.subr.mxu0 0.0
      %406 = vmatpush1.msra.mxu0 0.0
      %407 = vmatprep.subr.mxu0 0.0
      %408 = vmatpush1.msra.mxu0 0.0
      %409 = vmatprep.subr.mxu0 0.0
      %410 = vmatpush1.msra.mxu0 0.0
      %411 = vmatprep.subr.mxu0 0.0
      %412 = vmatpush1.msra.mxu0 0.0
      %413 = vmatprep.subr.mxu0 0.0
      %414 = vmatpush1.msra.mxu0 0.0
      %415 = vmatprep.subr.mxu0 0.0
      %416 = vmatpush1.msra.mxu0 0.0
      %417 = vmatprep.subr.mxu0 0.0
      %418 = vmatpush1.msra.mxu0 0.0
      %419 = vmatprep.subr.mxu0 0.0
      %420 = vmatpush1.msra.mxu0 0.0
      %421 = vmatprep.subr.mxu0 0.0
      %422 = vmatpush1.msra.mxu0 0.0
      %423 = vmatprep.subr.mxu0 0.0
      %424 = vmatpush1.msra.mxu0 0.0
      %425 = vmatprep.subr.mxu0 0.0
      %426 = vmatpush1.msra.mxu0 0.0
      %427 = vmatprep.subr.mxu0 0.0
      %428 = vmatpush1.msra.mxu0 %v339
      %429 = vmatprep.subr.mxu0 0.0
      %430 = vmatpush2.msra.mxu0 0.0
      %431 = vmatprep.subr.mxu0 0.0
      %432 = vmatpush2.msra.mxu0 0.0
      %433 = vmatprep.subr.mxu0 0.0
      %434 = vmatpush2.msra.mxu0 0.0
      %435 = vmatprep.subr.mxu0 0.0
      %436 = vmatpush2.msra.mxu0 0.0
      %437 = vmatprep.subr.mxu0 0.0
      %438 = vmatpush2.msra.mxu0 0.0
      %439 = vmatprep.subr.mxu0 0.0
      %440 = vmatpush2.msra.mxu0 0.0
      %441 = vmatprep.subr.mxu0 0.0
      %442 = vmatpush2.msra.mxu0 0.0
      %443 = vmatprep.subr.mxu0 0.0
      %444 = vmatpush2.msra.mxu0 0.0
      %445 = vmatprep.subr.mxu0 0.0
      %446 = vmatpush2.msra.mxu0 0.0
      %447 = vmatprep.subr.mxu0 0.0
      %448 = vmatpush2.msra.mxu0 0.0
      %449 = vmatprep.subr.mxu0 0.0
      %450 = vmatpush2.msra.mxu0 0.0
      %451 = vmatprep.subr.mxu0 0.0
      %452 = vmatpush2.msra.mxu0 0.0
      %453 = vmatprep.subr.mxu0 0.0
      %454 = vmatpush2.msra.mxu0 0.0
      %455 = vmatprep.subr.mxu0 0.0
      %456 = vmatpush2.msra.mxu0 0.0
      %457 = vmatprep.subr.mxu0 0.0
      %458 = vmatpush2.msra.mxu0 0.0
      %459 = vmatprep.subr.mxu0 0.0
      %460 = vmatpush2.msra.mxu0 0.0
      %461 = vmatprep.mubr.f32.mxu0 0.0
      %462 = vmatmul.mubr.f32.gmra.mxu0 %v392
      %v463 = vpop.f32.mrf.mxu0
      %v464 = vadd.f32 0.0, %v463
      %v465 = vpop.f32.mrf.mxu0
      %466 = vmatprep.mubr.f32.mxu0 0.0
      %467 = vmatmul.mubr.f32.gmra.mxu0 %v395
      %v468 = vpop.f32.mrf.mxu0
      %v469 = vadd.f32 0.0, %v468
      %v470 = vpop.f32.mrf.mxu0
      %471 = vdwg.mxu0
      %vm472 = vcmask 130048
      %v473 = vsel %vm472, %v464, -inf
      %474 = vmax.xlane.f32.xlu0 %v473
      %v475 = vpop.xlane.xlu0 %474
      %v476 = vsel %vm472, %v469, -inf
      %477 = vmax.xlane.f32.xlu0 %v476
      %v478 = vpop.xlane.xlu0 %477
      %v479 = vsub.f32 -inf, %v475
      %v480 = vsub.f32 -inf, %v478
      %v481 = vmul.f32 %v479, 1.442695
      %v482 = vpow.pop %v481
      %v483 = vmul.f32 %v480, 1.442695
      %v484 = vpow.pop %v483
      %v485 = vmul.f32 %v482, 0.0
      %v486 = vmul.f32 %v484, 0.0
      %v487 = vsub.f32 %v464, %v475
      %v488 = vsub.f32 %v469, %v478
      %v489 = vmul.f32 %v487, 1.442695
      %v490 = vpow.pop %v489
      %v491 = vmul.f32 %v488, 1.442695
      %v492 = vpow.pop %v491
      %v493 = vsel %vm472, %v490, 0.0
      %494 = vadd.xlane.f32.xlu0 %v493
      %v495 = vpop.xlane.xlu0 %494
      %v496 = vsel %vm472, %v492, 0.0
      %497 = vadd.xlane.f32.xlu0 %v496
      %v498 = vpop.xlane.xlu0 %497
      %v499 = vadd.f32 %v485, %v495
      %v500 = vadd.f32 %v486, %v498
      %v501 = vlog2.pop %v499
      %v502 = vmul.f32 %v501, 0.6931472
      %v503 = vlog2.pop %v500
      %v504 = vmul.f32 %v503, 0.6931472
      %v505 = vadd.f32 %v475, %v502
      %v506 = vadd.f32 %v478, %v504
      %v507 = vsub.f32 %v464, %v505
      %v508 = vsub.f32 %v469, %v506
      %v509 = vmul.f32 %v507, 1.442695
      %v510 = vpow.pop %v509
      %v511 = vmul.f32 %v508, 1.442695
      %v512 = vpow.pop %v511
      %v514 = vsel %vm472, %v358, 0
      %516 = vmatprep.subr.mxu0 0.0
      %517 = vmatpush1.msra.mxu0 0.0
      %518 = vmatprep.subr.mxu0 0.0
      %519 = vmatpush1.msra.mxu0 0.0
      %520 = vmatprep.subr.mxu0 0.0
      %521 = vmatpush1.msra.mxu0 0.0
      %522 = vmatprep.subr.mxu0 0.0
      %523 = vmatpush1.msra.mxu0 0.0
      %524 = vmatprep.subr.mxu0 0.0
      %525 = vmatpush1.msra.mxu0 0.0
      %526 = vmatprep.subr.mxu0 0.0
      %527 = vmatpush1.msra.mxu0 0.0
      %528 = vmatprep.subr.mxu0 0.0
      %529 = vmatpush1.msra.mxu0 0.0
      %530 = vmatprep.subr.mxu0 0.0
      %531 = vmatpush1.msra.mxu0 0.0
      %532 = vmatprep.subr.mxu0 0.0
      %533 = vmatpush1.msra.mxu0 0.0
      %534 = vmatprep.subr.mxu0 0.0
      %535 = vmatpush1.msra.mxu0 0.0
      %536 = vmatprep.subr.mxu0 0.0
      %537 = vmatpush1.msra.mxu0 0.0
      %538 = vmatprep.subr.mxu0 0.0
      %539 = vmatpush1.msra.mxu0 0.0
      %540 = vmatprep.subr.mxu0 0.0
      %541 = vmatpush1.msra.mxu0 0.0
      %542 = vmatprep.subr.mxu0 0.0
      %543 = vmatpush1.msra.mxu0 0.0
      %544 = vmatprep.subr.mxu0 0.0
      %545 = vmatpush1.msra.mxu0 %v512
      %546 = vmatprep.subr.mxu0 0.0
      %547 = vmatpush1.msra.mxu0 %v510
      %548 = vmatprep.subr.mxu0 0.0
      %549 = vmatpush2.msra.mxu0 0.0
      %550 = vmatprep.subr.mxu0 0.0
      %551 = vmatpush2.msra.mxu0 0.0
      %552 = vmatprep.subr.mxu0 0.0
      %553 = vmatpush2.msra.mxu0 0.0
      %554 = vmatprep.subr.mxu0 0.0
      %555 = vmatpush2.msra.mxu0 0.0
      %556 = vmatprep.subr.mxu0 0.0
      %557 = vmatpush2.msra.mxu0 0.0
      %558 = vmatprep.subr.mxu0 0.0
      %559 = vmatpush2.msra.mxu0 0.0
      %560 = vmatprep.subr.mxu0 0.0
      %561 = vmatpush2.msra.mxu0 0.0
      %562 = vmatprep.subr.mxu0 0.0
      %563 = vmatpush2.msra.mxu0 0.0
      %564 = vmatprep.subr.mxu0 0.0
      %565 = vmatpush2.msra.mxu0 0.0
      %566 = vmatprep.subr.mxu0 0.0
      %567 = vmatpush2.msra.mxu0 0.0
      %568 = vmatprep.subr.mxu0 0.0
      %569 = vmatpush2.msra.mxu0 0.0
      %570 = vmatprep.subr.mxu0 0.0
      %571 = vmatpush2.msra.mxu0 0.0
      %572 = vmatprep.subr.mxu0 0.0
      %573 = vmatpush2.msra.mxu0 0.0
      %574 = vmatprep.subr.mxu0 0.0
      %575 = vmatpush2.msra.mxu0 0.0
      %576 = vmatprep.subr.mxu0 0.0
      %577 = vmatpush2.msra.mxu0 0.0
      %578 = vmatprep.subr.mxu0 0.0
      %579 = vmatpush2.msra.mxu0 0.0
      %580 = vmatprep.mubr.f32.mxu0 0.0
      %581 = vmatmul.mubr.f32.gmra.mxu0 %v514
      %v582 = vpop.f32.mrf.mxu0
      %v583 = vadd.f32 0.0, %v582
      %v584 = vpop.f32.mrf.mxu0
      %585 = vdwg.mxu0
      %v587 = vsel %vm472, 1.0, 0
      %589 = vmatprep.subr.mxu0 0.0
      %590 = vmatpush1.msra.mxu0 0.0
      %591 = vmatprep.subr.mxu0 0.0
      %592 = vmatpush1.msra.mxu0 0.0
      %593 = vmatprep.subr.mxu0 0.0
      %594 = vmatpush1.msra.mxu0 0.0
      %595 = vmatprep.subr.mxu0 0.0
      %596 = vmatpush1.msra.mxu0 0.0
      %597 = vmatprep.subr.mxu0 0.0
      %598 = vmatpush1.msra.mxu0 0.0
      %599 = vmatprep.subr.mxu0 0.0
      %600 = vmatpush1.msra.mxu0 0.0
      %601 = vmatprep.subr.mxu0 0.0
      %602 = vmatpush1.msra.mxu0 0.0
      %603 = vmatprep.subr.mxu0 0.0
      %604 = vmatpush1.msra.mxu0 0.0
      %605 = vmatprep.subr.mxu0 0.0
      %606 = vmatpush1.msra.mxu0 0.0
      %607 = vmatprep.subr.mxu0 0.0
      %608 = vmatpush1.msra.mxu0 0.0
      %609 = vmatprep.subr.mxu0 0.0
      %610 = vmatpush1.msra.mxu0 0.0
      %611 = vmatprep.subr.mxu0 0.0
      %612 = vmatpush1.msra.mxu0 0.0
      %613 = vmatprep.subr.mxu0 0.0
      %614 = vmatpush1.msra.mxu0 0.0
      %615 = vmatprep.subr.mxu0 0.0
      %616 = vmatpush1.msra.mxu0 0.0
      %617 = vmatprep.subr.mxu0 0.0
      %618 = vmatpush1.msra.mxu0 %v512
      %619 = vmatprep.subr.mxu0 0.0
      %620 = vmatpush1.msra.mxu0 %v510
      %621 = vmatprep.subr.mxu0 0.0
      %622 = vmatpush2.msra.mxu0 0.0
      %623 = vmatprep.subr.mxu0 0.0
      %624 = vmatpush2.msra.mxu0 0.0
      %625 = vmatprep.subr.mxu0 0.0
      %626 = vmatpush2.msra.mxu0 0.0
      %627 = vmatprep.subr.mxu0 0.0
      %628 = vmatpush2.msra.mxu0 0.0
      %629 = vmatprep.subr.mxu0 0.0
      %630 = vmatpush2.msra.mxu0 0.0
      %631 = vmatprep.subr.mxu0 0.0
      %632 = vmatpush2.msra.mxu0 0.0
      %633 = vmatprep.subr.mxu0 0.0
      %634 = vmatpush2.msra.mxu0 0.0
      %635 = vmatprep.subr.mxu0 0.0
      %636 = vmatpush2.msra.mxu0 0.0
      %637 = vmatprep.subr.mxu0 0.0
      %638 = vmatpush2.msra.mxu0 0.0
      %639 = vmatprep.subr.mxu0 0.0
      %640 = vmatpush2.msra.mxu0 0.0
      %641 = vmatprep.subr.mxu0 0.0
      %642 = vmatpush2.msra.mxu0 0.0
      %643 = vmatprep.subr.mxu0 0.0
      %644 = vmatpush2.msra.mxu0 0.0
      %645 = vmatprep.subr.mxu0 0.0
      %646 = vmatpush2.msra.mxu0 0.0
      %647 = vmatprep.subr.mxu0 0.0
      %648 = vmatpush2.msra.mxu0 0.0
      %649 = vmatprep.subr.mxu0 0.0
      %650 = vmatpush2.msra.mxu0 0.0
      %651 = vmatprep.subr.mxu0 0.0
      %652 = vmatpush2.msra.mxu0 0.0
      %653 = vmatprep.mubr.f32.mxu0 0.0
      %654 = vmatmul.mubr.f32.gmra.mxu0 %v587
      %v655 = vpop.f32.mrf.mxu0
      %v656 = vadd.f32 1e-09, %v655
      %v657 = vpop.f32.mrf.mxu0
      %658 = vdwg.mxu0
      %v659 = vrcp.pop %v656
      %v660 = vlaneseq
      %v661 = vshrl.u32 %v660, 7
      %v662 = vsub.s32 0, %v661
      %v663 = vrot.slane %v659, %v662
      %v664 = vmul.f32 %v583, %v663
      %v665 = vld [vmem:[%s2] sm:$0xff]
      %v667 = vsel %vm262, %v665, 0
      %669 = vmatprep.subr.mxu0 0.0
      %670 = vmatpush1.msra.mxu0 0.0
      %671 = vmatprep.subr.mxu0 0.0
      %672 = vmatpush1.msra.mxu0 0.0
      %673 = vmatprep.subr.mxu0 0.0
      %674 = vmatpush1.msra.mxu0 0.0
      %675 = vmatprep.subr.mxu0 0.0
      %676 = vmatpush1.msra.mxu0 0.0
      %677 = vmatprep.subr.mxu0 0.0
      %678 = vmatpush1.msra.mxu0 0.0
      %679 = vmatprep.subr.mxu0 0.0
      %680 = vmatpush1.msra.mxu0 0.0
      %681 = vmatprep.subr.mxu0 0.0
      %682 = vmatpush1.msra.mxu0 0.0
      %683 = vmatprep.subr.mxu0 0.0
      %684 = vmatpush1.msra.mxu0 0.0
      %685 = vmatprep.subr.mxu0 0.0
      %686 = vmatpush1.msra.mxu0 0.0
      %687 = vmatprep.subr.mxu0 0.0
      %688 = vmatpush1.msra.mxu0 0.0
      %689 = vmatprep.subr.mxu0 0.0
      %690 = vmatpush1.msra.mxu0 0.0
      %691 = vmatprep.subr.mxu0 0.0
      %692 = vmatpush1.msra.mxu0 0.0
      %693 = vmatprep.subr.mxu0 0.0
      %694 = vmatpush1.msra.mxu0 0.0
      %695 = vmatprep.subr.mxu0 0.0
      %696 = vmatpush1.msra.mxu0 0.0
      %697 = vmatprep.subr.mxu0 0.0
      %698 = vmatpush1.msra.mxu0 0.0
      %699 = vmatprep.subr.mxu0 0.0
      %700 = vmatpush1.msra.mxu0 %v664
      %701 = vmatprep.subr.mxu0 0.0
      %702 = vmatpush2.msra.mxu0 0.0
      %703 = vmatprep.subr.mxu0 0.0
      %704 = vmatpush2.msra.mxu0 0.0
      %705 = vmatprep.subr.mxu0 0.0
      %706 = vmatpush2.msra.mxu0 0.0
      %707 = vmatprep.subr.mxu0 0.0
      %708 = vmatpush2.msra.mxu0 0.0
      %709 = vmatprep.subr.mxu0 0.0
      %710 = vmatpush2.msra.mxu0 0.0
      %711 = vmatprep.subr.mxu0 0.0
      %712 = vmatpush2.msra.mxu0 0.0
      %713 = vmatprep.subr.mxu0 0.0
      %714 = vmatpush2.msra.mxu0 0.0
      %715 = vmatprep.subr.mxu0 0.0
      %716 = vmatpush2.msra.mxu0 0.0
      %717 = vmatprep.subr.mxu0 0.0
      %718 = vmatpush2.msra.mxu0 0.0
      %719 = vmatprep.subr.mxu0 0.0
      %720 = vmatpush2.msra.mxu0 0.0
      %721 = vmatprep.subr.mxu0 0.0
      %722 = vmatpush2.msra.mxu0 0.0
      %723 = vmatprep.subr.mxu0 0.0
      %724 = vmatpush2.msra.mxu0 0.0
      %725 = vmatprep.subr.mxu0 0.0
      %726 = vmatpush2.msra.mxu0 0.0
      %727 = vmatprep.subr.mxu0 0.0
      %728 = vmatpush2.msra.mxu0 0.0
      %729 = vmatprep.subr.mxu0 0.0
      %730 = vmatpush2.msra.mxu0 0.0
      %731 = vmatprep.subr.mxu0 0.0
      %732 = vmatpush2.msra.mxu0 0.0
      %733 = vmatprep.mubr.f32.mxu0 0.0
      %734 = vmatmul.mubr.f32.gmra.mxu0 %v667
      %v735 = vpop.f32.mrf.mxu0
      %v736 = vadd.f32 0.0, %v735
      %v737 = vpop.f32.mrf.mxu0
      %738 = vdwg.mxu0
      %v739 = vsub.f32 %v349, %v736
      %v740 = vld [vmem:[%s4] sm:$0xff]
      %742 = vset.pattern.permute.xlu0 0
      %743 = vperm.xlu0 %742, %v740
      %v744 = vpop.permute.xlu0 %743
      %v746 = vadd.f32 %v739, %v744
      %747 = vst.msk [vmem:[%s253] sm:$0xff] %vm472, %v746
      %749 = vset.pattern.permute.xlu0 0
      %750 = vperm.xlu0 %749, %v746
      %v751 = vpop.permute.xlu0 %750
      %v753 = vsub.f32 %v746, %v751
      %v754 = vsel %vm472, %v753, 0.0
      %755 = vadd.xlane.f32.xlu0 %v754
      %v756 = vpop.xlane.xlu0 %755
      %v757 = vadd.f32 %v756, 0.0
      %v758 = vmul.f32 %v753, %v753
      %v759 = vsel %vm472, %v758, 0.0
      %760 = vadd.xlane.f32.xlu0 %v759
      %v761 = vpop.xlane.xlu0 %760
      %v762 = vadd.f32 %v761, 0.0
      %vm763 = vcmask 7168
      %764 = vst.msk [vmem:[%s257] sm:$0xff] %vm763, %v746
      %vm765 = vcmask 15368
      %766 = vst.msk [vmem:[%s257] sm:$0xff] %vm765, %v757
      %vm767 = vcmask 23568
      %768 = vst.msk [vmem:[%s257] sm:$0xff] %vm767, %v762
      %p769 = scmp.lt.s32.totalorder %s18, 1
      %s770 = scalar_select %p769, %s18, 1
      %s771 = smul.addr %s770, 8
      %s772 = scalar_lea.vmem %s5, %s771
      %p773 = scmp.lt.s32.totalorder %s18, 1
      %s774 = scalar_select %p773, %s18, 1
      %s775 = smul.addr %s774, 8
      %s776 = scalar_lea.vmem %s6, %s775
      // Predicated region
      $region41: #{g_transformer_forward.2} parent=39 // pred_check
        %p777 = pneg %p146
      $region42: #{g_transformer_forward.2} parent=39 // pred_check_branch
        %779 = sbr.rel (%p777) target = $region44
      $region43: #{g_transformer_forward.2} parent=39 // pred_region
        _
      $region44: #{g_transformer_forward.2} parent=39 // pred_fallthru
        _
      // Predicated region
      $region45: #{g_transformer_forward.2} parent=39 // pred_check
        %p780 = pneg %p172
      $region46: #{g_transformer_forward.2} parent=39 // pred_check_branch
        %782 = sbr.rel (%p780) target = $region48
      $region47: #{g_transformer_forward.2} parent=39 // pred_region
        _
      $region48: #{g_transformer_forward.2} parent=39 // pred_fallthru
        _
    $region40: #{g_transformer_forward.2} parent=5 // pred_fallthru
      _
    %p783 = scmp.le.s32.totalorder 2, %s13
    // Predicated region
    $region49: #{g_transformer_forward.2} parent=5 // pred_check
      %p784 = pneg %p783
    $region50: #{g_transformer_forward.2} parent=5 // pred_check_branch
      %786 = sbr.rel (%p784) target = $region52
    $region51: #{g_transformer_forward.2} parent=5 // pred_region
      %s787 = ssub.s32 %s13, 2
      // Predicated region
      $region53: #{g_transformer_forward.2} parent=51 // pred_check
        %p788 = pneg %p152
      $region54: #{g_transformer_forward.2} parent=51 // pred_check_branch
        %790 = sbr.rel (%p788) target = $region56
      $region55: #{g_transformer_forward.2} parent=51 // pred_region
        %p791 = scmp.lt.s32.totalorder %s19, 1
        %s792 = scalar_select %p791, %s19, 1
        %s793 = smul.addr %s792, 8
        %s794 = scalar_lea.vmem %s5, %s793
      $region56: #{g_transformer_forward.2} parent=51 // pred_fallthru
        _
      // Predicated region
      $region57: #{g_transformer_forward.2} parent=51 // pred_check
        %p795 = pneg %p178
      $region58: #{g_transformer_forward.2} parent=51 // pred_check_branch
        %797 = sbr.rel (%p795) target = $region60
      $region59: #{g_transformer_forward.2} parent=51 // pred_region
        %p798 = scmp.lt.s32.totalorder %s19, 1
        %s799 = scalar_select %p798, %s19, 1
        %s800 = smul.addr %s799, 8
        %s801 = scalar_lea.vmem %s6, %s800
      $region60: #{g_transformer_forward.2} parent=51 // pred_fallthru
        _
    $region52: #{g_transformer_forward.2} parent=5 // pred_fallthru
      _
  $region6: #{g_transformer_forward.2} parent=0 // loop_footer
    %s17 = sadd.s32 1, %s13
  $region7: #{g_transformer_forward.2} parent=0 // loop_footer_branch
    %12 = sbr.rel target = $region3
  $region8: #{g_transformer_forward.2} parent=0 // loop_exit
    _

</llo_original>
